<compile_context>
chip_gen: v7x
topology: tpu7x:2x2x1
jax: 0.10.0
libtpu: 0.0.40
codegen_flags: <defaults>
</compile_context>

<pallas_src>
import math

import jax
import jax.numpy as jnp
from jax.experimental import pallas as pl
from jax.experimental.pallas import tpu as pltpu


def _ca_kernel(x_ref, ph_ref, pw_ref, eh_ref, ew_ref,
               w1_ref, b1_ref, bn_scale_ref, bn_shift_ref,
               wh_ref, bh_ref, ww_ref, bw_ref, out_ref):
    # Streamed block is 2-D: (R, S) with R = nb*C, S = H*W (lane dense).
    # Adaptive average pooling as matmuls against tiny constant matrices
    # (runs on the otherwise idle MXU; no cross-lane VPU/XLU reductions).
    x_h = jnp.dot(x_ref[...], ph_ref[...],
                  preferred_element_type=jnp.float32)              # (R, H)
    x_w = jnp.dot(x_ref[...], pw_ref[...],
                  preferred_element_type=jnp.float32)              # (R, W)

    b1 = b1_ref[...]              # (nb*mip, 1)  tiled bias
    bn_scale = bn_scale_ref[...]  # (nb*mip, 1)  folded BN scale
    bn_shift = bn_shift_ref[...]  # (nb*mip, 1)  folded BN shift

    def gate(pooled, wo, bo):
        # Per-batch 1x1 conv as ONE matmul (block-diagonal weights) + folded
        # eval-mode BatchNorm + Hardswish, then the output conv + sigmoid.
        y = jnp.dot(w1_ref[...], pooled,
                    preferred_element_type=jnp.float32) + b1        # (nb*mip, L)
        y = y * bn_scale + bn_shift
        y = y * jnp.clip(y + 3.0, 0.0, 6.0) * (1.0 / 6.0)           # Hardswish
        z = jnp.dot(wo, y, preferred_element_type=jnp.float32) + bo  # (R, L)
        return jax.nn.sigmoid(z)

    a_h = gate(x_h, wh_ref[...], bh_ref[...])                       # (R, H)
    a_w = gate(x_w, ww_ref[...], bw_ref[...])                       # (R, W)

    # Broadcast the gates over the flattened spatial dim via matmuls and fuse
    # with the final elementwise multiply (one full-lane store per block).
    g = (jnp.dot(a_h, eh_ref[...], preferred_element_type=jnp.float32) *
         jnp.dot(a_w, ew_ref[...], preferred_element_type=jnp.float32))  # (R, S)
    out_ref[...] = (x_ref[...] * g).astype(out_ref.dtype)


def _round_up(x, m):
    return -(-x // m) * m


def _vmem_padded_bytes(shape, itemsize):
    """VMEM footprint with the last two dims rounded up to the (8, 128) tile."""
    shape = tuple(shape)
    if len(shape) < 2:
        shape = (1,) * (2 - len(shape)) + shape
    lead = 1
    for d in shape[:-2]:
        lead *= d
    return lead * _round_up(shape[-2], 8) * _round_up(shape[-1], 128) * itemsize


def _pick_nb(n, c, s, mip, itemsize, budget_bytes, fixed_aux_bytes, max_nb):
    """Largest nb <= min(n, max_nb) whose padded VMEM footprint fits the budget."""
    # Block second-to-last dim (nb*c) must be a multiple of 8 unless the block
    # spans the whole (padded) first dim.
    step = 8 // math.gcd(c, 8)
    best = None
    for nb in range(1, min(n, max_nb) + 1):
        if nb % step and nb != n:
            continue
        block = nb * c * s * itemsize
        bd = (_vmem_padded_bytes((nb * mip, nb * c), 4) +
              2 * _vmem_padded_bytes((nb * c, nb * mip), 4))
        # 4x block: in+out double buffered; +3x: block-sized in-kernel temps.
        cost = 7 * block + 2 * bd + fixed_aux_bytes + (4 << 20)
        if cost <= budget_bytes:
            best = nb
    if best is None:
        best = step if step <= n else n
    return best


def ca_forward(x, params, *, max_nb=128):
    """x: (N, C, H, W) float32. params: dict from init_params (eval-mode BN)."""
    n, c, h, w = x.shape
    s = h * w
    mip = params["w1"].shape[0]
    itemsize = x.dtype.itemsize

    # Generation-aware VMEM budget (64 MiB physical on v7x, 128 MiB v5e/v6e).
    try:
        vmem_cap = int(getattr(pltpu.get_tpu_info(), "vmem_capacity_bytes",
                               64 << 20))
    except Exception:
        vmem_cap = 64 << 20

    # Constant pooling / broadcast matrices (flat spatial index = i*W + j).
    rep_h = jnp.repeat(jnp.eye(h, dtype=jnp.float32), w, axis=0)   # (S, H)
    til_w = jnp.tile(jnp.eye(w, dtype=jnp.float32), (h, 1))        # (S, W)
    p_h = rep_h * (1.0 / w)     # x @ p_h : mean over W -> (R, H)
    p_w = til_w * (1.0 / h)     # x @ p_w : mean over H -> (R, W)
    e_h = rep_h.T               # (H, S): a_h @ e_h broadcasts a_h over W
    e_w = til_w.T               # (W, S): a_w @ e_w broadcasts a_w over H

    fixed_aux_bytes = sum(_vmem_padded_bytes(a.shape, 4)
                          for a in (p_h, p_w, e_h, e_w))

    budget = int(0.7 * vmem_cap)
    nb = _pick_nb(n, c, s, mip, itemsize, budget, 2 * fixed_aux_bytes, max_nb)

    grid_len = int(pl.cdiv(n, nb))
    n_pad = grid_len * nb

    x2 = x.reshape(n * c, s)                         # lane-dense streaming layout
    if n_pad != n:
        x2 = jnp.pad(x2, ((0, (n_pad - n) * c), (0, 0)))

    # Per-batch channel mixing batched into single matmuls: block-diagonal
    # weights + tiled biases / BN scale-shift over the nb elements of a block.
    eye_nb = jnp.eye(nb, dtype=jnp.float32)
    w1_bd = jnp.kron(eye_nb, params["w1"])           # (nb*mip, nb*C)
    wh_bd = jnp.kron(eye_nb, params["wh"])           # (nb*C, nb*mip)
    ww_bd = jnp.kron(eye_nb, params["ww"])           # (nb*C, nb*mip)
    b1_t = jnp.tile(params["b1"], (nb, 1))
    bn_scale_t = jnp.tile(params["bn_scale"], (nb, 1))
    bn_shift_t = jnp.tile(params["bn_shift"], (nb, 1))
    bh_t = jnp.tile(params["bh"], (nb, 1))
    bw_t = jnp.tile(params["bw"], (nb, 1))

    aux = [p_h, p_w, e_h, e_w,
           w1_bd, b1_t, bn_scale_t, bn_shift_t,
           wh_bd, bh_t, ww_bd, bw_t]

    block_bytes = nb * c * s * itemsize
    aux_bytes = sum(_vmem_padded_bytes(a.shape, a.dtype.itemsize) for a in aux)
    # in+out double buffered + block-sized intermediates + params (x2) + margin.
    required = 7 * block_bytes + 2 * aux_bytes + (8 << 20)
    vmem_limit = int(min(max(required, 32 << 20), int(0.9 * vmem_cap)))

    def full(shape):
        return pl.BlockSpec(shape, lambda i: (0,) * len(shape))

    out2 = pl.pallas_call(
        _ca_kernel,
        out_shape=jax.ShapeDtypeStruct((n_pad * c, s), x.dtype),
        grid_spec=pltpu.PrefetchScalarGridSpec(
            num_scalar_prefetch=0,
            grid=(grid_len,),
            in_specs=[pl.BlockSpec((nb * c, s), lambda i: (i, 0))]
                     + [full(a.shape) for a in aux],
            out_specs=pl.BlockSpec((nb * c, s), lambda i: (i, 0)),
        ),
        compiler_params=pltpu.CompilerParams(
            dimension_semantics=("parallel",),
            vmem_limit_bytes=vmem_limit),
    )(x2, *aux)

    if n_pad != n:
        out2 = out2[: n * c]
    return out2.reshape(n, c, h, w)


def init_params(key, inp, reduction=16):
    mip = inp // reduction
    ks = jax.random.split(key, 8)
    # 1x1 conv weights stored as (out_ch, in_ch); biases as column vectors.
    w1 = jax.random.normal(ks[0], (mip, inp), jnp.float32) * 0.1
    b1 = jax.random.normal(ks[1], (mip, 1), jnp.float32) * 0.1
    wh = jax.random.normal(ks[2], (inp, mip), jnp.float32) * 0.1
    bh = jax.random.normal(ks[3], (inp, 1), jnp.float32) * 0.1
    ww = jax.random.normal(ks[4], (inp, mip), jnp.float32) * 0.1
    bw = jax.random.normal(ks[5], (inp, 1), jnp.float32) * 0.1
    # BatchNorm (eval mode) parameters folded into scale/shift.
    gamma = 1.0 + 0.1 * jax.random.normal(ks[6], (mip, 1), jnp.float32)
    beta = 0.1 * jax.random.normal(ks[7], (mip, 1), jnp.float32)
    running_mean = jnp.zeros((mip, 1), jnp.float32)
    running_var = jnp.ones((mip, 1), jnp.float32)
    eps = 1e-5
    bn_scale = gamma / jnp.sqrt(running_var + eps)
    bn_shift = beta - running_mean * bn_scale
    return dict(w1=w1, b1=b1, bn_scale=bn_scale, bn_shift=bn_shift,
                wh=wh, bh=bh, ww=ww, bw=bw)


def ca_reference(x, p):
    """Pure-JAX reference mirroring the PyTorch forward (eval-mode BN)."""
    x_h = jnp.mean(x, axis=3)                       # (N, C, H)
    x_w = jnp.mean(x, axis=2)                       # (N, C, W)
    y = jnp.concatenate([x_h, x_w], axis=2)         # (N, C, H+W)
    y = jnp.einsum("oc,ncl->nol", p["w1"], y) + p["b1"][None]
    y = y * p["bn_scale"][None] + p["bn_shift"][None]
    y = y * jnp.clip(y + 3.0, 0.0, 6.0) / 6.0
    h = x.shape[2]
    yh, yw = y[:, :, :h], y[:, :, h:]
    a_h = jax.nn.sigmoid(jnp.einsum("om,nml->nol", p["wh"], yh) + p["bh"][None])
    a_w = jax.nn.sigmoid(jnp.einsum("om,nml->nol", p["ww"], yw) + p["bw"][None])
    return x * a_h[:, :, :, None] * a_w[:, :, None, :]


if __name__ == "__main__":
    key = jax.random.PRNGKey(0)
    kx1, kx2, kx3, kp = jax.random.split(key, 4)

    C, H, W = 32, 16, 16                  # inp=32, reduction=16 -> mip=2
    params = init_params(kp, C, reduction=16)

    # Case 1: N=2 -> single block, grid=(1,).
    x1 = jax.random.normal(kx1, (2, C, H, W), jnp.float32)
    out1 = jax.block_until_ready(ca_forward(x1, params))
    ref1 = ca_reference(x1, params)
    assert out1.shape == x1.shape
    assert jnp.allclose(out1, ref1, atol=3e-5, rtol=3e-5), "mismatch (N=2)"

    # Case 2: N=8 -> one bigger batched block (nb=8).
    x2 = jax.random.normal(kx2, (8, C, H, W), jnp.float32)
    out2 = jax.block_until_ready(ca_forward(x2, params))
    ref2 = ca_reference(x2, params)
    assert jnp.allclose(out2, ref2, atol=3e-5, rtol=3e-5), "mismatch (N=8)"

    # Case 3: N=5 with a small forced block (nb=2) -> multi-step grid with
    # cdiv + batch padding (exercises the non-dividing-batch path).
    x3 = jax.random.normal(kx3, (5, C, H, W), jnp.float32)
    out3 = jax.block_until_ready(ca_forward(x3, params, max_nb=2))
    ref3 = ca_reference(x3, params)
    assert jnp.allclose(out3, ref3, atol=3e-5, rtol=3e-5), "mismatch (N=5)"

    print("KERNEL_OK")
</pallas_src>

<mosaic_0001>
module attributes {stable_mosaic.version = 11 : i64} {
  func.func @_ca_kernel(%arg0: i32, %arg1: memref<64x256xf32, #tpu.memory_space<vmem>>, %arg2: memref<256x16xf32, #tpu.memory_space<vmem>>, %arg3: memref<256x16xf32, #tpu.memory_space<vmem>>, %arg4: memref<16x256xf32, #tpu.memory_space<vmem>>, %arg5: memref<16x256xf32, #tpu.memory_space<vmem>>, %arg6: memref<4x64xf32, #tpu.memory_space<vmem>>, %arg7: memref<4x1xf32, #tpu.memory_space<vmem>>, %arg8: memref<4x1xf32, #tpu.memory_space<vmem>>, %arg9: memref<4x1xf32, #tpu.memory_space<vmem>>, %arg10: memref<64x4xf32, #tpu.memory_space<vmem>>, %arg11: memref<64x1xf32, #tpu.memory_space<vmem>>, %arg12: memref<64x4xf32, #tpu.memory_space<vmem>>, %arg13: memref<64x1xf32, #tpu.memory_space<vmem>>, %arg14: memref<64x256xf32, #tpu.memory_space<vmem>>) attributes {dimension_semantics = [#tpu.dimension_semantics<parallel>], iteration_bounds = array<i64: 1>, scalar_prefetch = 0 : i64, scratch_operands = 0 : i64, tpu.core_type = #tpu.core_type<tc>, window_params = [{transform_indices = @transform_0, window_bounds = array<i64: 64, 256>}, {pipeline_mode = #tpu.pipeline_mode<synchronous>, transform_indices = @transform_1, window_bounds = array<i64: 256, 16>}, {pipeline_mode = #tpu.pipeline_mode<synchronous>, transform_indices = @transform_2, window_bounds = array<i64: 256, 16>}, {pipeline_mode = #tpu.pipeline_mode<synchronous>, transform_indices = @transform_3, window_bounds = array<i64: 16, 256>}, {pipeline_mode = #tpu.pipeline_mode<synchronous>, transform_indices = @transform_4, window_bounds = array<i64: 16, 256>}, {pipeline_mode = #tpu.pipeline_mode<synchronous>, transform_indices = @transform_5, window_bounds = array<i64: 4, 64>}, {pipeline_mode = #tpu.pipeline_mode<synchronous>, transform_indices = @transform_6, window_bounds = array<i64: 4, 1>}, {pipeline_mode = #tpu.pipeline_mode<synchronous>, transform_indices = @transform_7, window_bounds = array<i64: 4, 1>}, {pipeline_mode = #tpu.pipeline_mode<synchronous>, transform_indices = @transform_8, window_bounds = array<i64: 4, 1>}, {pipeline_mode = #tpu.pipeline_mode<synchronous>, transform_indices = @transform_9, window_bounds = array<i64: 64, 4>}, {pipeline_mode = #tpu.pipeline_mode<synchronous>, transform_indices = @transform_10, window_bounds = array<i64: 64, 1>}, {pipeline_mode = #tpu.pipeline_mode<synchronous>, transform_indices = @transform_11, window_bounds = array<i64: 64, 4>}, {pipeline_mode = #tpu.pipeline_mode<synchronous>, transform_indices = @transform_12, window_bounds = array<i64: 64, 1>}, {transform_indices = @transform_13, window_bounds = array<i64: 64, 256>}]} {
    %c0 = arith.constant 0 : index
    %c0_0 = arith.constant 0 : index
    %0 = vector.load %arg1[%c0, %c0_0] : memref<64x256xf32, #tpu.memory_space<vmem>>, vector<64x256xf32>
    %c0_1 = arith.constant 0 : index
    %c0_2 = arith.constant 0 : index
    %1 = vector.load %arg2[%c0_1, %c0_2] : memref<256x16xf32, #tpu.memory_space<vmem>>, vector<256x16xf32>
    %cst = arith.constant dense<0.000000e+00> : vector<64x16xf32>
    %2 = tpu.matmul %0, %1, %cst {dimension_numbers = #tpu.dot_dimension_numbers<[1], [0], [0], [1], [0, 0, 1, 1], [], []>} : vector<64x256xf32>, vector<256x16xf32>, vector<64x16xf32> -> vector<64x16xf32>
    %c0_3 = arith.constant 0 : index
    %c0_4 = arith.constant 0 : index
    %3 = vector.load %arg1[%c0_3, %c0_4] : memref<64x256xf32, #tpu.memory_space<vmem>>, vector<64x256xf32>
    %c0_5 = arith.constant 0 : index
    %c0_6 = arith.constant 0 : index
    %4 = vector.load %arg3[%c0_5, %c0_6] : memref<256x16xf32, #tpu.memory_space<vmem>>, vector<256x16xf32>
    %cst_7 = arith.constant dense<0.000000e+00> : vector<64x16xf32>
    %5 = tpu.matmul %3, %4, %cst_7 {dimension_numbers = #tpu.dot_dimension_numbers<[1], [0], [0], [1], [0, 0, 1, 1], [], []>} : vector<64x256xf32>, vector<256x16xf32>, vector<64x16xf32> -> vector<64x16xf32>
    %c0_8 = arith.constant 0 : index
    %c0_9 = arith.constant 0 : index
    %6 = vector.load %arg7[%c0_8, %c0_9] : memref<4x1xf32, #tpu.memory_space<vmem>>, vector<4x1xf32>
    %c0_10 = arith.constant 0 : index
    %c0_11 = arith.constant 0 : index
    %7 = vector.load %arg8[%c0_10, %c0_11] : memref<4x1xf32, #tpu.memory_space<vmem>>, vector<4x1xf32>
    %c0_12 = arith.constant 0 : index
    %c0_13 = arith.constant 0 : index
    %8 = vector.load %arg9[%c0_12, %c0_13] : memref<4x1xf32, #tpu.memory_space<vmem>>, vector<4x1xf32>
    %c0_14 = arith.constant 0 : index
    %c0_15 = arith.constant 0 : index
    %9 = vector.load %arg10[%c0_14, %c0_15] : memref<64x4xf32, #tpu.memory_space<vmem>>, vector<64x4xf32>
    %c0_16 = arith.constant 0 : index
    %c0_17 = arith.constant 0 : index
    %10 = vector.load %arg11[%c0_16, %c0_17] : memref<64x1xf32, #tpu.memory_space<vmem>>, vector<64x1xf32>
    %c0_18 = arith.constant 0 : index
    %c0_19 = arith.constant 0 : index
    %11 = vector.load %arg6[%c0_18, %c0_19] : memref<4x64xf32, #tpu.memory_space<vmem>>, vector<4x64xf32>
    %cst_20 = arith.constant dense<0.000000e+00> : vector<4x16xf32>
    %12 = tpu.matmul %11, %2, %cst_20 {dimension_numbers = #tpu.dot_dimension_numbers<[1], [0], [0], [1], [0, 0, 1, 1], [], []>} : vector<4x64xf32>, vector<64x16xf32>, vector<4x16xf32> -> vector<4x16xf32>
    %13 = vector.broadcast %6 : vector<4x1xf32> to vector<4x16xf32>
    %14 = arith.addf %12, %13 : vector<4x16xf32>
    %15 = vector.broadcast %7 : vector<4x1xf32> to vector<4x16xf32>
    %16 = arith.mulf %14, %15 : vector<4x16xf32>
    %17 = vector.broadcast %8 : vector<4x1xf32> to vector<4x16xf32>
    %18 = arith.addf %16, %17 : vector<4x16xf32>
    %cst_21 = arith.constant 3.000000e+00 : f32
    %19 = vector.broadcast %cst_21 : f32 to vector<4x16xf32>
    %20 = arith.addf %18, %19 : vector<4x16xf32>
    %cst_22 = arith.constant 0.000000e+00 : f32
    %cst_23 = arith.constant 6.000000e+00 : f32
    %21 = vector.broadcast %cst_22 : f32 to vector<4x16xf32>
    %22 = arith.maximumf %21, %20 : vector<4x16xf32>
    %23 = vector.broadcast %cst_23 : f32 to vector<4x16xf32>
    %24 = arith.minimumf %23, %22 : vector<4x16xf32>
    %25 = arith.mulf %18, %24 : vector<4x16xf32>
    %cst_24 = arith.constant 0.166666672 : f32
    %26 = vector.broadcast %cst_24 : f32 to vector<4x16xf32>
    %27 = arith.mulf %25, %26 : vector<4x16xf32>
    %cst_25 = arith.constant dense<0.000000e+00> : vector<64x16xf32>
    %28 = tpu.matmul %9, %27, %cst_25 {dimension_numbers = #tpu.dot_dimension_numbers<[1], [0], [0], [1], [0, 0, 1, 1], [], []>} : vector<64x4xf32>, vector<4x16xf32>, vector<64x16xf32> -> vector<64x16xf32>
    %29 = vector.broadcast %10 : vector<64x1xf32> to vector<64x16xf32>
    %30 = arith.addf %28, %29 : vector<64x16xf32>
    %31 = arith.negf %30 : vector<64x16xf32>
    %32 = math.exp %31 : vector<64x16xf32>
    %cst_26 = arith.constant 1.000000e+00 : f32
    %33 = vector.broadcast %cst_26 : f32 to vector<64x16xf32>
    %34 = arith.addf %33, %32 : vector<64x16xf32>
    %35 = arith.divf %33, %34 : vector<64x16xf32>
    %c0_27 = arith.constant 0 : index
    %c0_28 = arith.constant 0 : index
    %36 = vector.load %arg12[%c0_27, %c0_28] : memref<64x4xf32, #tpu.memory_space<vmem>>, vector<64x4xf32>
    %c0_29 = arith.constant 0 : index
    %c0_30 = arith.constant 0 : index
    %37 = vector.load %arg13[%c0_29, %c0_30] : memref<64x1xf32, #tpu.memory_space<vmem>>, vector<64x1xf32>
    %c0_31 = arith.constant 0 : index
    %c0_32 = arith.constant 0 : index
    %38 = vector.load %arg6[%c0_31, %c0_32] : memref<4x64xf32, #tpu.memory_space<vmem>>, vector<4x64xf32>
    %cst_33 = arith.constant dense<0.000000e+00> : vector<4x16xf32>
    %39 = tpu.matmul %38, %5, %cst_33 {dimension_numbers = #tpu.dot_dimension_numbers<[1], [0], [0], [1], [0, 0, 1, 1], [], []>} : vector<4x64xf32>, vector<64x16xf32>, vector<4x16xf32> -> vector<4x16xf32>
    %40 = vector.broadcast %6 : vector<4x1xf32> to vector<4x16xf32>
    %41 = arith.addf %39, %40 : vector<4x16xf32>
    %42 = vector.broadcast %7 : vector<4x1xf32> to vector<4x16xf32>
    %43 = arith.mulf %41, %42 : vector<4x16xf32>
    %44 = vector.broadcast %8 : vector<4x1xf32> to vector<4x16xf32>
    %45 = arith.addf %43, %44 : vector<4x16xf32>
    %cst_34 = arith.constant 3.000000e+00 : f32
    %46 = vector.broadcast %cst_34 : f32 to vector<4x16xf32>
    %47 = arith.addf %45, %46 : vector<4x16xf32>
    %cst_35 = arith.constant 0.000000e+00 : f32
    %cst_36 = arith.constant 6.000000e+00 : f32
    %48 = vector.broadcast %cst_35 : f32 to vector<4x16xf32>
    %49 = arith.maximumf %48, %47 : vector<4x16xf32>
    %50 = vector.broadcast %cst_36 : f32 to vector<4x16xf32>
    %51 = arith.minimumf %50, %49 : vector<4x16xf32>
    %52 = arith.mulf %45, %51 : vector<4x16xf32>
    %cst_37 = arith.constant 0.166666672 : f32
    %53 = vector.broadcast %cst_37 : f32 to vector<4x16xf32>
    %54 = arith.mulf %52, %53 : vector<4x16xf32>
    %cst_38 = arith.constant dense<0.000000e+00> : vector<64x16xf32>
    %55 = tpu.matmul %36, %54, %cst_38 {dimension_numbers = #tpu.dot_dimension_numbers<[1], [0], [0], [1], [0, 0, 1, 1], [], []>} : vector<64x4xf32>, vector<4x16xf32>, vector<64x16xf32> -> vector<64x16xf32>
    %56 = vector.broadcast %37 : vector<64x1xf32> to vector<64x16xf32>
    %57 = arith.addf %55, %56 : vector<64x16xf32>
    %58 = arith.negf %57 : vector<64x16xf32>
    %59 = math.exp %58 : vector<64x16xf32>
    %cst_39 = arith.constant 1.000000e+00 : f32
    %60 = vector.broadcast %cst_39 : f32 to vector<64x16xf32>
    %61 = arith.addf %60, %59 : vector<64x16xf32>
    %62 = arith.divf %60, %61 : vector<64x16xf32>
    %c0_40 = arith.constant 0 : index
    %c0_41 = arith.constant 0 : index
    %63 = vector.load %arg4[%c0_40, %c0_41] : memref<16x256xf32, #tpu.memory_space<vmem>>, vector<16x256xf32>
    %cst_42 = arith.constant dense<0.000000e+00> : vector<64x256xf32>
    %64 = tpu.matmul %35, %63, %cst_42 {dimension_numbers = #tpu.dot_dimension_numbers<[1], [0], [0], [1], [0, 0, 1, 1], [], []>} : vector<64x16xf32>, vector<16x256xf32>, vector<64x256xf32> -> vector<64x256xf32>
    %c0_43 = arith.constant 0 : index
    %c0_44 = arith.constant 0 : index
    %65 = vector.load %arg5[%c0_43, %c0_44] : memref<16x256xf32, #tpu.memory_space<vmem>>, vector<16x256xf32>
    %cst_45 = arith.constant dense<0.000000e+00> : vector<64x256xf32>
    %66 = tpu.matmul %62, %65, %cst_45 {dimension_numbers = #tpu.dot_dimension_numbers<[1], [0], [0], [1], [0, 0, 1, 1], [], []>} : vector<64x16xf32>, vector<16x256xf32>, vector<64x256xf32> -> vector<64x256xf32>
    %67 = arith.mulf %64, %66 : vector<64x256xf32>
    %c0_46 = arith.constant 0 : index
    %c0_47 = arith.constant 0 : index
    %68 = vector.load %arg1[%c0_46, %c0_47] : memref<64x256xf32, #tpu.memory_space<vmem>>, vector<64x256xf32>
    %69 = arith.mulf %68, %67 : vector<64x256xf32>
    %c0_48 = arith.constant 0 : index
    %c0_49 = arith.constant 0 : index
    %70 = vector.load %arg14[%c0_48, %c0_49] : memref<64x256xf32, #tpu.memory_space<vmem>>, vector<64x256xf32>
    tpu.vector_store %arg14[%c0_48, %c0_49], %69 {strides = array<i32>} : memref<64x256xf32, #tpu.memory_space<vmem>>, vector<64x256xf32>,
    return
  }
  func.func @transform_0(%arg0: i32) -> (i32, i32) {
    %c0_i32 = arith.constant 0 : i32
    %c0_i32_0 = arith.constant 0 : i32
    return %arg0, %c0_i32 : i32, i32
  }
  func.func @transform_1(%arg0: i32) -> (i32, i32) {
    %c0_i32 = arith.constant 0 : i32
    %c0_i32_0 = arith.constant 0 : i32
    %c0_i32_1 = arith.constant 0 : i32
    return %c0_i32, %c0_i32_0 : i32, i32
  }
  func.func @transform_2(%arg0: i32) -> (i32, i32) {
    %c0_i32 = arith.constant 0 : i32
    %c0_i32_0 = arith.constant 0 : i32
    %c0_i32_1 = arith.constant 0 : i32
    return %c0_i32, %c0_i32_0 : i32, i32
  }
  func.func @transform_3(%arg0: i32) -> (i32, i32) {
    %c0_i32 = arith.constant 0 : i32
    %c0_i32_0 = arith.constant 0 : i32
    %c0_i32_1 = arith.constant 0 : i32
    return %c0_i32, %c0_i32_0 : i32, i32
  }
  func.func @transform_4(%arg0: i32) -> (i32, i32) {
    %c0_i32 = arith.constant 0 : i32
    %c0_i32_0 = arith.constant 0 : i32
    %c0_i32_1 = arith.constant 0 : i32
    return %c0_i32, %c0_i32_0 : i32, i32
  }
  func.func @transform_5(%arg0: i32) -> (i32, i32) {
    %c0_i32 = arith.constant 0 : i32
    %c0_i32_0 = arith.constant 0 : i32
    %c0_i32_1 = arith.constant 0 : i32
    return %c0_i32, %c0_i32_0 : i32, i32
  }
  func.func @transform_6(%arg0: i32) -> (i32, i32) {
    %c0_i32 = arith.constant 0 : i32
    %c0_i32_0 = arith.constant 0 : i32
    %c0_i32_1 = arith.constant 0 : i32
    return %c0_i32, %c0_i32_0 : i32, i32
  }
  func.func @transform_7(%arg0: i32) -> (i32, i32) {
    %c0_i32 = arith.constant 0 : i32
    %c0_i32_0 = arith.constant 0 : i32
    %c0_i32_1 = arith.constant 0 : i32
    return %c0_i32, %c0_i32_0 : i32, i32
  }
  func.func @transform_8(%arg0: i32) -> (i32, i32) {
    %c0_i32 = arith.constant 0 : i32
    %c0_i32_0 = arith.constant 0 : i32
    %c0_i32_1 = arith.constant 0 : i32
    return %c0_i32, %c0_i32_0 : i32, i32
  }
  func.func @transform_9(%arg0: i32) -> (i32, i32) {
    %c0_i32 = arith.constant 0 : i32
    %c0_i32_0 = arith.constant 0 : i32
    %c0_i32_1 = arith.constant 0 : i32
    return %c0_i32, %c0_i32_0 : i32, i32
  }
  func.func @transform_10(%arg0: i32) -> (i32, i32) {
    %c0_i32 = arith.constant 0 : i32
    %c0_i32_0 = arith.constant 0 : i32
    %c0_i32_1 = arith.constant 0 : i32
    return %c0_i32, %c0_i32_0 : i32, i32
  }
  func.func @transform_11(%arg0: i32) -> (i32, i32) {
    %c0_i32 = arith.constant 0 : i32
    %c0_i32_0 = arith.constant 0 : i32
    %c0_i32_1 = arith.constant 0 : i32
    return %c0_i32, %c0_i32_0 : i32, i32
  }
  func.func @transform_12(%arg0: i32) -> (i32, i32) {
    %c0_i32 = arith.constant 0 : i32
    %c0_i32_0 = arith.constant 0 : i32
    %c0_i32_1 = arith.constant 0 : i32
    return %c0_i32, %c0_i32_0 : i32, i32
  }
  func.func @transform_13(%arg0: i32) -> (i32, i32) {
    %c0_i32 = arith.constant 0 : i32
    %c0_i32_0 = arith.constant 0 : i32
    return %arg0, %c0_i32 : i32, i32
  }
}

</mosaic_0001>

<llo_original>
// kernel: tpu_custom_call.1
$region0: #{tpu_custom_call.1}
  #allocation0 [shape = 'u32[]', space=smem, size = 0x4, offset = 0x4, fixed_abs, tag = 'smem constant byte address 0x4 - core index']
  #allocation1 [shape = 'u32[144,128]{1,0:T(1,128)}', space=vmem, size = 0x12000, scoped, tag = 'internal scratch']
  %s0 = inlined_call_operand.vmem [shape: f32[64,256], index: 0, kind: input, shape index: {}]
  %s1 = inlined_call_operand.vmem [shape: f32[256,16], index: 1, kind: input, shape index: {}]
  %s2 = inlined_call_operand.vmem [shape: f32[256,16], index: 2, kind: input, shape index: {}]
  %s3 = inlined_call_operand.vmem [shape: f32[16,256], index: 3, kind: input, shape index: {}]
  %s4 = inlined_call_operand.vmem [shape: f32[16,256], index: 4, kind: input, shape index: {}]
  %s5 = inlined_call_operand.vmem [shape: f32[4,64], index: 5, kind: input, shape index: {}]
  %s6 = inlined_call_operand.vmem [shape: f32[4,1], index: 6, kind: input, shape index: {}]
  %s7 = inlined_call_operand.vmem [shape: f32[4,1], index: 7, kind: input, shape index: {}]
  %s8 = inlined_call_operand.vmem [shape: f32[4,1], index: 8, kind: input, shape index: {}]
  %s9 = inlined_call_operand.vmem [shape: f32[64,4], index: 9, kind: input, shape index: {}]
  %s10 = inlined_call_operand.vmem [shape: f32[64,1], index: 10, kind: input, shape index: {}]
  %s11 = inlined_call_operand.vmem [shape: f32[64,4], index: 11, kind: input, shape index: {}]
  %s12 = inlined_call_operand.vmem [shape: f32[64,1], index: 12, kind: input, shape index: {}]
  %s13 = inlined_call_operand.hbm [shape: f32[64,256], index: 13, kind: output, shape index: {}]
  %s14 = sld [smem:[#allocation0]]
  $region62: #{tpu_custom_call.1} parent=0
    _
  %s16 = ssub.s32 1, %s14
  %s17 = scalar_select 0, %s16, %s14
  $region1: #{tpu_custom_call.1} parent=0
    #allocation2 [shape = 'u8[65536]{0}', space=vmem, size = 0x10000, scoped, tag = 'output window, operand 0, single buffered']
    #allocation3 [shape = 's32[1]{0}', space=sflag, size = 0x4, scoped, tag = 'scoped memory for tpu_custom_call.1']
    %18 = vsyncpa [#allocation3], 0
    // Predicated region
    $region2: #{tpu_custom_call.1} parent=1 // pred_check
      _
    $region3: #{tpu_custom_call.1} parent=1 // pred_check_branch
      %20 = sbr.rel (0) target = $region5
    $region4: #{tpu_custom_call.1} parent=1 // pred_region
      _
    $region5: #{tpu_custom_call.1} parent=1 // pred_fallthru
      _
    // Predicated region
    $region6: #{tpu_custom_call.1} parent=1 // pred_check
      _
    $region7: #{tpu_custom_call.1} parent=1 // pred_check_branch
      %22 = sbr.rel (0) target = $region9
    $region8: #{tpu_custom_call.1} parent=1 // pred_region
      _
    $region9: #{tpu_custom_call.1} parent=1 // pred_fallthru
      _
    // Predicated region
    $region10: #{tpu_custom_call.1} parent=1 // pred_check
      _
    $region11: #{tpu_custom_call.1} parent=1 // pred_check_branch
      %24 = sbr.rel (0) target = $region13
    $region12: #{tpu_custom_call.1} parent=1 // pred_region
      _
    $region13: #{tpu_custom_call.1} parent=1 // pred_fallthru
      _
    // Predicated region
    $region14: #{tpu_custom_call.1} parent=1 // pred_check
      _
    $region15: #{tpu_custom_call.1} parent=1 // pred_check_branch
      %26 = sbr.rel (0) target = $region17
    $region16: #{tpu_custom_call.1} parent=1 // pred_region
      _
    $region17: #{tpu_custom_call.1} parent=1 // pred_fallthru
      _
    // Predicated region
    $region18: #{tpu_custom_call.1} parent=1 // pred_check
      _
    $region19: #{tpu_custom_call.1} parent=1 // pred_check_branch
      %28 = sbr.rel (0) target = $region21
    $region20: #{tpu_custom_call.1} parent=1 // pred_region
      _
    $region21: #{tpu_custom_call.1} parent=1 // pred_fallthru
      _
    // Predicated region
    $region22: #{tpu_custom_call.1} parent=1 // pred_check
      _
    $region23: #{tpu_custom_call.1} parent=1 // pred_check_branch
      %30 = sbr.rel (0) target = $region25
    $region24: #{tpu_custom_call.1} parent=1 // pred_region
      _
    $region25: #{tpu_custom_call.1} parent=1 // pred_fallthru
      _
    // Predicated region
    $region26: #{tpu_custom_call.1} parent=1 // pred_check
      _
    $region27: #{tpu_custom_call.1} parent=1 // pred_check_branch
      %32 = sbr.rel (0) target = $region29
    $region28: #{tpu_custom_call.1} parent=1 // pred_region
      _
    $region29: #{tpu_custom_call.1} parent=1 // pred_fallthru
      _
    // Predicated region
    $region30: #{tpu_custom_call.1} parent=1 // pred_check
      _
    $region31: #{tpu_custom_call.1} parent=1 // pred_check_branch
      %34 = sbr.rel (0) target = $region33
    $region32: #{tpu_custom_call.1} parent=1 // pred_region
      _
    $region33: #{tpu_custom_call.1} parent=1 // pred_fallthru
      _
    // Predicated region
    $region34: #{tpu_custom_call.1} parent=1 // pred_check
      _
    $region35: #{tpu_custom_call.1} parent=1 // pred_check_branch
      %36 = sbr.rel (0) target = $region37
    $region36: #{tpu_custom_call.1} parent=1 // pred_region
      _
    $region37: #{tpu_custom_call.1} parent=1 // pred_fallthru
      _
    // Predicated region
    $region38: #{tpu_custom_call.1} parent=1 // pred_check
      _
    $region39: #{tpu_custom_call.1} parent=1 // pred_check_branch
      %38 = sbr.rel (0) target = $region41
    $region40: #{tpu_custom_call.1} parent=1 // pred_region
      _
    $region41: #{tpu_custom_call.1} parent=1 // pred_fallthru
      _
    // Predicated region
    $region42: #{tpu_custom_call.1} parent=1 // pred_check
      _
    $region43: #{tpu_custom_call.1} parent=1 // pred_check_branch
      %40 = sbr.rel (0) target = $region45
    $region44: #{tpu_custom_call.1} parent=1 // pred_region
      _
    $region45: #{tpu_custom_call.1} parent=1 // pred_fallthru
      _
    // Predicated region
    $region46: #{tpu_custom_call.1} parent=1 // pred_check
      _
    $region47: #{tpu_custom_call.1} parent=1 // pred_check_branch
      %42 = sbr.rel (0) target = $region49
    $region48: #{tpu_custom_call.1} parent=1 // pred_region
      _
    $region49: #{tpu_custom_call.1} parent=1 // pred_fallthru
      _
    // Predicated region
    $region50: #{tpu_custom_call.1} parent=1 // pred_check
      _
    $region51: #{tpu_custom_call.1} parent=1 // pred_check_branch
      %44 = sbr.rel (0) target = $region53
    $region52: #{tpu_custom_call.1} parent=1 // pred_region
      _
    $region53: #{tpu_custom_call.1} parent=1 // pred_fallthru
      _
    %v45 = vld [vmem:[%s0] sm:$0xff]
    %v46 = vld [vmem:[%s0 + $0x8] sm:$0xff]
    %v47 = vld [vmem:[%s0 + $0x10] sm:$0xff]
    %v48 = vld [vmem:[%s0 + $0x18] sm:$0xff]
    %v49 = vld [vmem:[%s0 + $0x20] sm:$0xff]
    %v50 = vld [vmem:[%s0 + $0x28] sm:$0xff]
    %v51 = vld [vmem:[%s0 + $0x30] sm:$0xff]
    %v52 = vld [vmem:[%s0 + $0x38] sm:$0xff]
    %v53 = vld [vmem:[%s0 + $0x40] sm:$0xff]
    %v54 = vld [vmem:[%s0 + $0x48] sm:$0xff]
    %v55 = vld [vmem:[%s0 + $0x50] sm:$0xff]
    %v56 = vld [vmem:[%s0 + $0x58] sm:$0xff]
    %v57 = vld [vmem:[%s0 + $0x60] sm:$0xff]
    %v58 = vld [vmem:[%s0 + $0x68] sm:$0xff]
    %v59 = vld [vmem:[%s0 + $0x70] sm:$0xff]
    %v60 = vld [vmem:[%s0 + $0x78] sm:$0xff]
    %v61 = vld [vmem:[%s1] sm:$0xff]
    %v62 = vld [vmem:[%s1 + $0x8] sm:$0xff]
    %v63 = vld [vmem:[%s1 + $0x10] sm:$0xff]
    %v64 = vld [vmem:[%s1 + $0x18] sm:$0xff]
    %v65 = vld [vmem:[%s1 + $0x20] sm:$0xff]
    %v66 = vld [vmem:[%s1 + $0x28] sm:$0xff]
    %v67 = vld [vmem:[%s1 + $0x30] sm:$0xff]
    %v68 = vld [vmem:[%s1 + $0x38] sm:$0xff]
    %v69 = vld [vmem:[%s1 + $0x40] sm:$0xff]
    %v70 = vld [vmem:[%s1 + $0x48] sm:$0xff]
    %v71 = vld [vmem:[%s1 + $0x50] sm:$0xff]
    %v72 = vld [vmem:[%s1 + $0x58] sm:$0xff]
    %v73 = vld [vmem:[%s1 + $0x60] sm:$0xff]
    %v74 = vld [vmem:[%s1 + $0x68] sm:$0xff]
    %v75 = vld [vmem:[%s1 + $0x70] sm:$0xff]
    %v76 = vld [vmem:[%s1 + $0x78] sm:$0xff]
    %v77 = vld [vmem:[%s1 + $0x80] sm:$0xff]
    %v78 = vld [vmem:[%s1 + $0x88] sm:$0xff]
    %v79 = vld [vmem:[%s1 + $0x90] sm:$0xff]
    %v80 = vld [vmem:[%s1 + $0x98] sm:$0xff]
    %v81 = vld [vmem:[%s1 + $0xa0] sm:$0xff]
    %v82 = vld [vmem:[%s1 + $0xa8] sm:$0xff]
    %v83 = vld [vmem:[%s1 + $0xb0] sm:$0xff]
    %v84 = vld [vmem:[%s1 + $0xb8] sm:$0xff]
    %v85 = vld [vmem:[%s1 + $0xc0] sm:$0xff]
    %v86 = vld [vmem:[%s1 + $0xc8] sm:$0xff]
    %v87 = vld [vmem:[%s1 + $0xd0] sm:$0xff]
    %v88 = vld [vmem:[%s1 + $0xd8] sm:$0xff]
    %v89 = vld [vmem:[%s1 + $0xe0] sm:$0xff]
    %v90 = vld [vmem:[%s1 + $0xe8] sm:$0xff]
    %v91 = vld [vmem:[%s1 + $0xf0] sm:$0xff]
    %v92 = vld [vmem:[%s1 + $0xf8] sm:$0xff]
    %93 = vmatprep.subr.mxu0 0.0
    %94 = vmatpush1.msra.mxu0 %v61
    %95 = vmatprep.subr.mxu0 0.0
    %96 = vmatpush1.msra.mxu0 %v62
    %97 = vmatprep.subr.mxu0 0.0
    %98 = vmatpush1.msra.mxu0 %v63
    %99 = vmatprep.subr.mxu0 0.0
    %100 = vmatpush1.msra.mxu0 %v64
    %101 = vmatprep.subr.mxu0 0.0
    %102 = vmatpush1.msra.mxu0 %v65
    %103 = vmatprep.subr.mxu0 0.0
    %104 = vmatpush1.msra.mxu0 %v66
    %105 = vmatprep.subr.mxu0 0.0
    %106 = vmatpush1.msra.mxu0 %v67
    %107 = vmatprep.subr.mxu0 0.0
    %108 = vmatpush1.msra.mxu0 %v68
    %109 = vmatprep.subr.mxu0 0.0
    %110 = vmatpush1.msra.mxu0 %v69
    %111 = vmatprep.subr.mxu0 0.0
    %112 = vmatpush1.msra.mxu0 %v70
    %113 = vmatprep.subr.mxu0 0.0
    %114 = vmatpush1.msra.mxu0 %v71
    %115 = vmatprep.subr.mxu0 0.0
    %116 = vmatpush1.msra.mxu0 %v72
    %117 = vmatprep.subr.mxu0 0.0
    %118 = vmatpush1.msra.mxu0 %v73
    %119 = vmatprep.subr.mxu0 0.0
    %120 = vmatpush1.msra.mxu0 %v74
    %121 = vmatprep.subr.mxu0 0.0
    %122 = vmatpush1.msra.mxu0 %v75
    %123 = vmatprep.subr.mxu0 0.0
    %124 = vmatpush1.msra.mxu0 %v76
    %125 = vmatprep.subr.mxu0 0.0
    %126 = vmatpush1.msra.mxu0 %v77
    %127 = vmatprep.subr.mxu0 0.0
    %128 = vmatpush1.msra.mxu0 %v78
    %129 = vmatprep.subr.mxu0 0.0
    %130 = vmatpush1.msra.mxu0 %v79
    %131 = vmatprep.subr.mxu0 0.0
    %132 = vmatpush1.msra.mxu0 %v80
    %133 = vmatprep.subr.mxu0 0.0
    %134 = vmatpush1.msra.mxu0 %v81
    %135 = vmatprep.subr.mxu0 0.0
    %136 = vmatpush1.msra.mxu0 %v82
    %137 = vmatprep.subr.mxu0 0.0
    %138 = vmatpush1.msra.mxu0 %v83
    %139 = vmatprep.subr.mxu0 0.0
    %140 = vmatpush1.msra.mxu0 %v84
    %141 = vmatprep.subr.mxu0 0.0
    %142 = vmatpush1.msra.mxu0 %v85
    %143 = vmatprep.subr.mxu0 0.0
    %144 = vmatpush1.msra.mxu0 %v86
    %145 = vmatprep.subr.mxu0 0.0
    %146 = vmatpush1.msra.mxu0 %v87
    %147 = vmatprep.subr.mxu0 0.0
    %148 = vmatpush1.msra.mxu0 %v88
    %149 = vmatprep.subr.mxu0 0.0
    %150 = vmatpush1.msra.mxu0 %v89
    %151 = vmatprep.subr.mxu0 0.0
    %152 = vmatpush1.msra.mxu0 %v90
    %153 = vmatprep.subr.mxu0 0.0
    %154 = vmatpush1.msra.mxu0 %v91
    %155 = vmatprep.subr.mxu0 0.0
    %156 = vmatpush1.msra.mxu0 %v92
    %157 = vmatprep.mubr.f32.mxu0 %v46
    %158 = vmatmul.mubr.f32.gmra.mrb[0].mxu0 %v45
    %v159 = vpop.f32.mrb[0].mxu0
    %v160 = vadd.f32 0.0, %v159
    %v161 = vpop.f32.mrb[0].mxu0
    %162 = vmatprep.mubr.f32.mxu0 %v48
    %163 = vmatmul.mubr.f32.gmra.mrb[0].mxu0 %v47
    %v164 = vpop.f32.mrb[0].mxu0
    %v165 = vadd.f32 0.0, %v164
    %v166 = vpop.f32.mrb[0].mxu0
    %167 = vmatprep.mubr.f32.mxu0 %v50
    %168 = vmatmul.mubr.f32.gmra.mrb[0].mxu0 %v49
    %v169 = vpop.f32.mrb[0].mxu0
    %v170 = vadd.f32 0.0, %v169
    %v171 = vpop.f32.mrb[0].mxu0
    %172 = vmatprep.mubr.f32.mxu0 %v52
    %173 = vmatmul.mubr.f32.gmra.mrb[0].mxu0 %v51
    %v174 = vpop.f32.mrb[0].mxu0
    %v175 = vadd.f32 0.0, %v174
    %v176 = vpop.f32.mrb[0].mxu0
    %177 = vmatprep.mubr.f32.mxu0 %v54
    %178 = vmatmul.mubr.f32.gmra.mrb[0].mxu0 %v53
    %v179 = vpop.f32.mrb[0].mxu0
    %v180 = vadd.f32 0.0, %v179
    %v181 = vpop.f32.mrb[0].mxu0
    %182 = vmatprep.mubr.f32.mxu0 %v56
    %183 = vmatmul.mubr.f32.gmra.mrb[0].mxu0 %v55
    %v184 = vpop.f32.mrb[0].mxu0
    %v185 = vadd.f32 0.0, %v184
    %v186 = vpop.f32.mrb[0].mxu0
    %187 = vmatprep.mubr.f32.mxu0 %v58
    %188 = vmatmul.mubr.f32.gmra.mrb[0].mxu0 %v57
    %v189 = vpop.f32.mrb[0].mxu0
    %v190 = vadd.f32 0.0, %v189
    %v191 = vpop.f32.mrb[0].mxu0
    %192 = vmatprep.mubr.f32.mxu0 %v60
    %193 = vmatmul.mubr.f32.gmra.mrb[0].mxu0 %v59
    %v194 = vpop.f32.mrb[0].mxu0
    %v195 = vadd.f32 0.0, %v194
    %v196 = vpop.f32.mrb[0].mxu0
    %197 = vdwg.mxu0
    %v198 = vld [vmem:[%s2] sm:$0xff]
    %v199 = vld [vmem:[%s2 + $0x8] sm:$0xff]
    %v200 = vld [vmem:[%s2 + $0x10] sm:$0xff]
    %v201 = vld [vmem:[%s2 + $0x18] sm:$0xff]
    %v202 = vld [vmem:[%s2 + $0x20] sm:$0xff]
    %v203 = vld [vmem:[%s2 + $0x28] sm:$0xff]
    %v204 = vld [vmem:[%s2 + $0x30] sm:$0xff]
    %v205 = vld [vmem:[%s2 + $0x38] sm:$0xff]
    %v206 = vld [vmem:[%s2 + $0x40] sm:$0xff]
    %v207 = vld [vmem:[%s2 + $0x48] sm:$0xff]
    %v208 = vld [vmem:[%s2 + $0x50] sm:$0xff]
    %v209 = vld [vmem:[%s2 + $0x58] sm:$0xff]
    %v210 = vld [vmem:[%s2 + $0x60] sm:$0xff]
    %v211 = vld [vmem:[%s2 + $0x68] sm:$0xff]
    %v212 = vld [vmem:[%s2 + $0x70] sm:$0xff]
    %v213 = vld [vmem:[%s2 + $0x78] sm:$0xff]
    %v214 = vld [vmem:[%s2 + $0x80] sm:$0xff]
    %v215 = vld [vmem:[%s2 + $0x88] sm:$0xff]
    %v216 = vld [vmem:[%s2 + $0x90] sm:$0xff]
    %v217 = vld [vmem:[%s2 + $0x98] sm:$0xff]
    %v218 = vld [vmem:[%s2 + $0xa0] sm:$0xff]
    %v219 = vld [vmem:[%s2 + $0xa8] sm:$0xff]
    %v220 = vld [vmem:[%s2 + $0xb0] sm:$0xff]
    %v221 = vld [vmem:[%s2 + $0xb8] sm:$0xff]
    %v222 = vld [vmem:[%s2 + $0xc0] sm:$0xff]
    %v223 = vld [vmem:[%s2 + $0xc8] sm:$0xff]
    %v224 = vld [vmem:[%s2 + $0xd0] sm:$0xff]
    %v225 = vld [vmem:[%s2 + $0xd8] sm:$0xff]
    %v226 = vld [vmem:[%s2 + $0xe0] sm:$0xff]
    %v227 = vld [vmem:[%s2 + $0xe8] sm:$0xff]
    %v228 = vld [vmem:[%s2 + $0xf0] sm:$0xff]
    %v229 = vld [vmem:[%s2 + $0xf8] sm:$0xff]
    %230 = vmatprep.subr.mxu0 0.0
    %231 = vmatpush1.msra.mxu0 %v198
    %232 = vmatprep.subr.mxu0 0.0
    %233 = vmatpush1.msra.mxu0 %v199
    %234 = vmatprep.subr.mxu0 0.0
    %235 = vmatpush1.msra.mxu0 %v200
    %236 = vmatprep.subr.mxu0 0.0
    %237 = vmatpush1.msra.mxu0 %v201
    %238 = vmatprep.subr.mxu0 0.0
    %239 = vmatpush1.msra.mxu0 %v202
    %240 = vmatprep.subr.mxu0 0.0
    %241 = vmatpush1.msra.mxu0 %v203
    %242 = vmatprep.subr.mxu0 0.0
    %243 = vmatpush1.msra.mxu0 %v204
    %244 = vmatprep.subr.mxu0 0.0
    %245 = vmatpush1.msra.mxu0 %v205
    %246 = vmatprep.subr.mxu0 0.0
    %247 = vmatpush1.msra.mxu0 %v206
    %248 = vmatprep.subr.mxu0 0.0
    %249 = vmatpush1.msra.mxu0 %v207
    %250 = vmatprep.subr.mxu0 0.0
    %251 = vmatpush1.msra.mxu0 %v208
    %252 = vmatprep.subr.mxu0 0.0
    %253 = vmatpush1.msra.mxu0 %v209
    %254 = vmatprep.subr.mxu0 0.0
    %255 = vmatpush1.msra.mxu0 %v210
    %256 = vmatprep.subr.mxu0 0.0
    %257 = vmatpush1.msra.mxu0 %v211
    %258 = vmatprep.subr.mxu0 0.0
    %259 = vmatpush1.msra.mxu0 %v212
    %260 = vmatprep.subr.mxu0 0.0
    %261 = vmatpush1.msra.mxu0 %v213
    %262 = vmatprep.subr.mxu0 0.0
    %263 = vmatpush1.msra.mxu0 %v214
    %264 = vmatprep.subr.mxu0 0.0
    %265 = vmatpush1.msra.mxu0 %v215
    %266 = vmatprep.subr.mxu0 0.0
    %267 = vmatpush1.msra.mxu0 %v216
    %268 = vmatprep.subr.mxu0 0.0
    %269 = vmatpush1.msra.mxu0 %v217
    %270 = vmatprep.subr.mxu0 0.0
    %271 = vmatpush1.msra.mxu0 %v218
    %272 = vmatprep.subr.mxu0 0.0
    %273 = vmatpush1.msra.mxu0 %v219
    %274 = vmatprep.subr.mxu0 0.0
    %275 = vmatpush1.msra.mxu0 %v220
    %276 = vmatprep.subr.mxu0 0.0
    %277 = vmatpush1.msra.mxu0 %v221
    %278 = vmatprep.subr.mxu0 0.0
    %279 = vmatpush1.msra.mxu0 %v222
    %280 = vmatprep.subr.mxu0 0.0
    %281 = vmatpush1.msra.mxu0 %v223
    %282 = vmatprep.subr.mxu0 0.0
    %283 = vmatpush1.msra.mxu0 %v224
    %284 = vmatprep.subr.mxu0 0.0
    %285 = vmatpush1.msra.mxu0 %v225
    %286 = vmatprep.subr.mxu0 0.0
    %287 = vmatpush1.msra.mxu0 %v226
    %288 = vmatprep.subr.mxu0 0.0
    %289 = vmatpush1.msra.mxu0 %v227
    %290 = vmatprep.subr.mxu0 0.0
    %291 = vmatpush1.msra.mxu0 %v228
    %292 = vmatprep.subr.mxu0 0.0
    %293 = vmatpush1.msra.mxu0 %v229
    %294 = vmatprep.mubr.f32.mxu0 %v46
    %295 = vmatmul.mubr.f32.gmra.mrb[0].mxu0 %v45
    %v296 = vpop.f32.mrb[0].mxu0
    %v297 = vadd.f32 0.0, %v296
    %v298 = vpop.f32.mrb[0].mxu0
    %299 = vmatprep.mubr.f32.mxu0 %v48
    %300 = vmatmul.mubr.f32.gmra.mrb[0].mxu0 %v47
    %v301 = vpop.f32.mrb[0].mxu0
    %v302 = vadd.f32 0.0, %v301
    %v303 = vpop.f32.mrb[0].mxu0
    %304 = vmatprep.mubr.f32.mxu0 %v50
    %305 = vmatmul.mubr.f32.gmra.mrb[0].mxu0 %v49
    %v306 = vpop.f32.mrb[0].mxu0
    %v307 = vadd.f32 0.0, %v306
    %v308 = vpop.f32.mrb[0].mxu0
    %309 = vmatprep.mubr.f32.mxu0 %v52
    %310 = vmatmul.mubr.f32.gmra.mrb[0].mxu0 %v51
    %v311 = vpop.f32.mrb[0].mxu0
    %v312 = vadd.f32 0.0, %v311
    %v313 = vpop.f32.mrb[0].mxu0
    %314 = vmatprep.mubr.f32.mxu0 %v54
    %315 = vmatmul.mubr.f32.gmra.mrb[0].mxu0 %v53
    %v316 = vpop.f32.mrb[0].mxu0
    %v317 = vadd.f32 0.0, %v316
    %v318 = vpop.f32.mrb[0].mxu0
    %319 = vmatprep.mubr.f32.mxu0 %v56
    %320 = vmatmul.mubr.f32.gmra.mrb[0].mxu0 %v55
    %v321 = vpop.f32.mrb[0].mxu0
    %v322 = vadd.f32 0.0, %v321
    %v323 = vpop.f32.mrb[0].mxu0
    %324 = vmatprep.mubr.f32.mxu0 %v58
    %325 = vmatmul.mubr.f32.gmra.mrb[0].mxu0 %v57
    %v326 = vpop.f32.mrb[0].mxu0
    %v327 = vadd.f32 0.0, %v326
    %v328 = vpop.f32.mrb[0].mxu0
    %329 = vmatprep.mubr.f32.mxu0 %v60
    %330 = vmatmul.mubr.f32.gmra.mrb[0].mxu0 %v59
    %v331 = vpop.f32.mrb[0].mxu0
    %v332 = vadd.f32 0.0, %v331
    %v333 = vpop.f32.mrb[0].mxu0
    %334 = vdwg.mxu0
    %v335 = vld [vmem:[%s6] sm:$0xf]
    %v336 = vld [vmem:[%s7] sm:$0xf]
    %v337 = vld [vmem:[%s8] sm:$0xf]
    %v338 = vld [vmem:[%s9] sm:$0xff]
    %v339 = vld [vmem:[%s9 + $0x8] sm:$0xff]
    %v340 = vld [vmem:[%s9 + $0x10] sm:$0xff]
    %v341 = vld [vmem:[%s9 + $0x18] sm:$0xff]
    %v342 = vld [vmem:[%s9 + $0x20] sm:$0xff]
    %v343 = vld [vmem:[%s9 + $0x28] sm:$0xff]
    %v344 = vld [vmem:[%s9 + $0x30] sm:$0xff]
    %v345 = vld [vmem:[%s9 + $0x38] sm:$0xff]
    %v346 = vld [vmem:[%s10] sm:$0xff]
    %v347 = vld [vmem:[%s10 + $0x8] sm:$0xff]
    %v348 = vld [vmem:[%s10 + $0x10] sm:$0xff]
    %v349 = vld [vmem:[%s10 + $0x18] sm:$0xff]
    %v350 = vld [vmem:[%s10 + $0x20] sm:$0xff]
    %v351 = vld [vmem:[%s10 + $0x28] sm:$0xff]
    %v352 = vld [vmem:[%s10 + $0x30] sm:$0xff]
    %v353 = vld [vmem:[%s10 + $0x38] sm:$0xff]
    %v354 = vld [vmem:[%s5] sm:$0xf]
    %356 = vset.pattern.permute.xlu0 0
    %357 = vperm.xlu0 %356, %v335
    %v358 = vpop.permute.xlu0 %357
    %vm360 = vcmask 523264
    %v362 = vsel %vm360, %v354, 0
    %364 = vmatprep.subr.mxu0 0.0
    %365 = vmatpush1.msra.mxu0 %v160
    %366 = vmatprep.subr.mxu0 0.0
    %367 = vmatpush1.msra.mxu0 %v165
    %368 = vmatprep.subr.mxu0 0.0
    %369 = vmatpush1.msra.mxu0 %v170
    %370 = vmatprep.subr.mxu0 0.0
    %371 = vmatpush1.msra.mxu0 %v175
    %372 = vmatprep.subr.mxu0 0.0
    %373 = vmatpush1.msra.mxu0 %v180
    %374 = vmatprep.subr.mxu0 0.0
    %375 = vmatpush1.msra.mxu0 %v185
    %376 = vmatprep.subr.mxu0 0.0
    %377 = vmatpush1.msra.mxu0 %v190
    %378 = vmatprep.subr.mxu0 0.0
    %379 = vmatpush1.msra.mxu0 %v195
    %380 = vmatprep.subr.mxu0 0.0
    %381 = vmatpush1.msra.mxu0 0.0
    %382 = vmatprep.subr.mxu0 0.0
    %383 = vmatpush1.msra.mxu0 0.0
    %384 = vmatprep.subr.mxu0 0.0
    %385 = vmatpush1.msra.mxu0 0.0
    %386 = vmatprep.subr.mxu0 0.0
    %387 = vmatpush1.msra.mxu0 0.0
    %388 = vmatprep.subr.mxu0 0.0
    %389 = vmatpush1.msra.mxu0 0.0
    %390 = vmatprep.subr.mxu0 0.0
    %391 = vmatpush1.msra.mxu0 0.0
    %392 = vmatprep.subr.mxu0 0.0
    %393 = vmatpush1.msra.mxu0 0.0
    %394 = vmatprep.subr.mxu0 0.0
    %395 = vmatpush1.msra.mxu0 0.0
    %396 = vmatprep.subr.mxu0 0.0
    %397 = vmatpush1.msra.mxu0 0.0
    %398 = vmatprep.subr.mxu0 0.0
    %399 = vmatpush1.msra.mxu0 0.0
    %400 = vmatprep.subr.mxu0 0.0
    %401 = vmatpush1.msra.mxu0 0.0
    %402 = vmatprep.subr.mxu0 0.0
    %403 = vmatpush1.msra.mxu0 0.0
    %404 = vmatprep.subr.mxu0 0.0
    %405 = vmatpush1.msra.mxu0 0.0
    %406 = vmatprep.subr.mxu0 0.0
    %407 = vmatpush1.msra.mxu0 0.0
    %408 = vmatprep.subr.mxu0 0.0
    %409 = vmatpush1.msra.mxu0 0.0
    %410 = vmatprep.subr.mxu0 0.0
    %411 = vmatpush1.msra.mxu0 0.0
    %412 = vmatprep.subr.mxu0 0.0
    %413 = vmatpush1.msra.mxu0 0.0
    %414 = vmatprep.subr.mxu0 0.0
    %415 = vmatpush1.msra.mxu0 0.0
    %416 = vmatprep.subr.mxu0 0.0
    %417 = vmatpush1.msra.mxu0 0.0
    %418 = vmatprep.subr.mxu0 0.0
    %419 = vmatpush1.msra.mxu0 0.0
    %420 = vmatprep.subr.mxu0 0.0
    %421 = vmatpush1.msra.mxu0 0.0
    %422 = vmatprep.subr.mxu0 0.0
    %423 = vmatpush1.msra.mxu0 0.0
    %424 = vmatprep.subr.mxu0 0.0
    %425 = vmatpush1.msra.mxu0 0.0
    %426 = vmatprep.subr.mxu0 0.0
    %427 = vmatpush1.msra.mxu0 0.0
    %428 = vmatprep.mubr.f32.mxu0 0.0
    %429 = vmatmul.mubr.f32.gmra.mrb[0].mxu0 %v362
    %v430 = vpop.f32.mrb[0].mxu0
    %v431 = vadd.f32 %v358, %v430
    %v432 = vpop.f32.mrb[0].mxu0
    %433 = vdwg.mxu0
    %435 = vset.pattern.permute.xlu0 0
    %436 = vperm.xlu0 %435, %v336
    %v437 = vpop.permute.xlu0 %436
    %v439 = vmul.f32 %v431, %v437
    %441 = vset.pattern.permute.xlu0 0
    %442 = vperm.xlu0 %441, %v337
    %v443 = vpop.permute.xlu0 %442
    %v445 = vadd.f32 %v439, %v443
    %v446 = vadd.f32 %v445, 3.0
    %v447 = vmax.f32 %v446, 0.0
    %v448 = vmin.f32 %v447, 6.0
    %v449 = vmul.f32 %v445, %v448
    %v450 = vmul.f32 %v449, 0.16666667
    %452 = vset.pattern.permute.xlu0 0
    %453 = vperm.xlu0 %452, %v346
    %v454 = vpop.permute.xlu0 %453
    %457 = vset.pattern.permute.xlu0 0
    %458 = vperm.xlu0 %457, %v347
    %v459 = vpop.permute.xlu0 %458
    %462 = vset.pattern.permute.xlu0 0
    %463 = vperm.xlu0 %462, %v348
    %v464 = vpop.permute.xlu0 %463
    %467 = vset.pattern.permute.xlu0 0
    %468 = vperm.xlu0 %467, %v349
    %v469 = vpop.permute.xlu0 %468
    %472 = vset.pattern.permute.xlu0 0
    %473 = vperm.xlu0 %472, %v350
    %v474 = vpop.permute.xlu0 %473
    %477 = vset.pattern.permute.xlu0 0
    %478 = vperm.xlu0 %477, %v351
    %v479 = vpop.permute.xlu0 %478
    %482 = vset.pattern.permute.xlu0 0
    %483 = vperm.xlu0 %482, %v352
    %v484 = vpop.permute.xlu0 %483
    %487 = vset.pattern.permute.xlu0 0
    %488 = vperm.xlu0 %487, %v353
    %v489 = vpop.permute.xlu0 %488
    %vm491 = vcmask 31744
    %v493 = vsel %vm491, %v338, 0
    %v496 = vsel %vm491, %v339, 0
    %v499 = vsel %vm491, %v340, 0
    %v502 = vsel %vm491, %v341, 0
    %v505 = vsel %vm491, %v342, 0
    %v508 = vsel %vm491, %v343, 0
    %v511 = vsel %vm491, %v344, 0
    %v514 = vsel %vm491, %v345, 0
    %vm516 = vcmask 1043456
    %v518 = vsel %vm516, %v450, 0
    %520 = vmatprep.subr.mxu0 0.0
    %521 = vmatpush1.msra.mxu0 %v518
    %522 = vmatprep.subr.mxu0 0.0
    %523 = vmatpush1.msra.mxu0 0.0
    %524 = vmatprep.subr.mxu0 0.0
    %525 = vmatpush1.msra.mxu0 0.0
    %526 = vmatprep.subr.mxu0 0.0
    %527 = vmatpush1.msra.mxu0 0.0
    %528 = vmatprep.subr.mxu0 0.0
    %529 = vmatpush1.msra.mxu0 0.0
    %530 = vmatprep.subr.mxu0 0.0
    %531 = vmatpush1.msra.mxu0 0.0
    %532 = vmatprep.subr.mxu0 0.0
    %533 = vmatpush1.msra.mxu0 0.0
    %534 = vmatprep.subr.mxu0 0.0
    %535 = vmatpush1.msra.mxu0 0.0
    %536 = vmatprep.subr.mxu0 0.0
    %537 = vmatpush1.msra.mxu0 0.0
    %538 = vmatprep.subr.mxu0 0.0
    %539 = vmatpush1.msra.mxu0 0.0
    %540 = vmatprep.subr.mxu0 0.0
    %541 = vmatpush1.msra.mxu0 0.0
    %542 = vmatprep.subr.mxu0 0.0
    %543 = vmatpush1.msra.mxu0 0.0
    %544 = vmatprep.subr.mxu0 0.0
    %545 = vmatpush1.msra.mxu0 0.0
    %546 = vmatprep.subr.mxu0 0.0
    %547 = vmatpush1.msra.mxu0 0.0
    %548 = vmatprep.subr.mxu0 0.0
    %549 = vmatpush1.msra.mxu0 0.0
    %550 = vmatprep.subr.mxu0 0.0
    %551 = vmatpush1.msra.mxu0 0.0
    %552 = vmatprep.subr.mxu0 0.0
    %553 = vmatpush1.msra.mxu0 0.0
    %554 = vmatprep.subr.mxu0 0.0
    %555 = vmatpush1.msra.mxu0 0.0
    %556 = vmatprep.subr.mxu0 0.0
    %557 = vmatpush1.msra.mxu0 0.0
    %558 = vmatprep.subr.mxu0 0.0
    %559 = vmatpush1.msra.mxu0 0.0
    %560 = vmatprep.subr.mxu0 0.0
    %561 = vmatpush1.msra.mxu0 0.0
    %562 = vmatprep.subr.mxu0 0.0
    %563 = vmatpush1.msra.mxu0 0.0
    %564 = vmatprep.subr.mxu0 0.0
    %565 = vmatpush1.msra.mxu0 0.0
    %566 = vmatprep.subr.mxu0 0.0
    %567 = vmatpush1.msra.mxu0 0.0
    %568 = vmatprep.subr.mxu0 0.0
    %569 = vmatpush1.msra.mxu0 0.0
    %570 = vmatprep.subr.mxu0 0.0
    %571 = vmatpush1.msra.mxu0 0.0
    %572 = vmatprep.subr.mxu0 0.0
    %573 = vmatpush1.msra.mxu0 0.0
    %574 = vmatprep.subr.mxu0 0.0
    %575 = vmatpush1.msra.mxu0 0.0
    %576 = vmatprep.subr.mxu0 0.0
    %577 = vmatpush1.msra.mxu0 0.0
    %578 = vmatprep.subr.mxu0 0.0
    %579 = vmatpush1.msra.mxu0 0.0
    %580 = vmatprep.subr.mxu0 0.0
    %581 = vmatpush1.msra.mxu0 0.0
    %582 = vmatprep.subr.mxu0 0.0
    %583 = vmatpush1.msra.mxu0 0.0
    %584 = vmatprep.mubr.f32.mxu0 0.0
    %585 = vmatmul.mubr.f32.gmra.mrb[0].mxu0 %v493
    %v586 = vpop.f32.mrb[0].mxu0
    %v587 = vadd.f32 %v454, %v586
    %v588 = vpop.f32.mrb[0].mxu0
    %589 = vmatprep.mubr.f32.mxu0 0.0
    %590 = vmatmul.mubr.f32.gmra.mrb[0].mxu0 %v496
    %v591 = vpop.f32.mrb[0].mxu0
    %v592 = vadd.f32 %v459, %v591
    %v593 = vpop.f32.mrb[0].mxu0
    %594 = vmatprep.mubr.f32.mxu0 0.0
    %595 = vmatmul.mubr.f32.gmra.mrb[0].mxu0 %v499
    %v596 = vpop.f32.mrb[0].mxu0
    %v597 = vadd.f32 %v464, %v596
    %v598 = vpop.f32.mrb[0].mxu0
    %599 = vmatprep.mubr.f32.mxu0 0.0
    %600 = vmatmul.mubr.f32.gmra.mrb[0].mxu0 %v502
    %v601 = vpop.f32.mrb[0].mxu0
    %v602 = vadd.f32 %v469, %v601
    %v603 = vpop.f32.mrb[0].mxu0
    %604 = vmatprep.mubr.f32.mxu0 0.0
    %605 = vmatmul.mubr.f32.gmra.mrb[0].mxu0 %v505
    %v606 = vpop.f32.mrb[0].mxu0
    %v607 = vadd.f32 %v474, %v606
    %v608 = vpop.f32.mrb[0].mxu0
    %609 = vmatprep.mubr.f32.mxu0 0.0
    %610 = vmatmul.mubr.f32.gmra.mrb[0].mxu0 %v508
    %v611 = vpop.f32.mrb[0].mxu0
    %v612 = vadd.f32 %v479, %v611
    %v613 = vpop.f32.mrb[0].mxu0
    %614 = vmatprep.mubr.f32.mxu0 0.0
    %615 = vmatmul.mubr.f32.gmra.mrb[0].mxu0 %v511
    %v616 = vpop.f32.mrb[0].mxu0
    %v617 = vadd.f32 %v484, %v616
    %v618 = vpop.f32.mrb[0].mxu0
    %619 = vmatprep.mubr.f32.mxu0 0.0
    %620 = vmatmul.mubr.f32.gmra.mrb[0].mxu0 %v514
    %v621 = vpop.f32.mrb[0].mxu0
    %v622 = vadd.f32 %v489, %v621
    %v623 = vpop.f32.mrb[0].mxu0
    %624 = vdwg.mxu0
    %v625 = vxor.u32 %v587, 2147483648
    %v626 = vxor.u32 %v592, 2147483648
    %v627 = vxor.u32 %v597, 2147483648
    %v628 = vxor.u32 %v602, 2147483648
    %v629 = vxor.u32 %v607, 2147483648
    %v630 = vxor.u32 %v612, 2147483648
    %v631 = vxor.u32 %v617, 2147483648
    %v632 = vxor.u32 %v622, 2147483648
    %v633 = vmul.f32 %v625, 1.442695
    %v634 = vpow.pop %v633
    %v635 = vmul.f32 %v626, 1.442695
    %v636 = vpow.pop %v635
    %v637 = vmul.f32 %v627, 1.442695
    %v638 = vpow.pop %v637
    %v639 = vmul.f32 %v628, 1.442695
    %v640 = vpow.pop %v639
    %v641 = vmul.f32 %v629, 1.442695
    %v642 = vpow.pop %v641
    %v643 = vmul.f32 %v630, 1.442695
    %v644 = vpow.pop %v643
    %v645 = vmul.f32 %v631, 1.442695
    %v646 = vpow.pop %v645
    %v647 = vmul.f32 %v632, 1.442695
    %v648 = vpow.pop %v647
    %v649 = vadd.f32 %v634, 1.0
    %v650 = vadd.f32 %v636, 1.0
    %v651 = vadd.f32 %v638, 1.0
    %v652 = vadd.f32 %v640, 1.0
    %v653 = vadd.f32 %v642, 1.0
    %v654 = vadd.f32 %v644, 1.0
    %v655 = vadd.f32 %v646, 1.0
    %v656 = vadd.f32 %v648, 1.0
    %v657 = vrcp.pop %v649
    %v658 = vmul.f32 1.0, %v657
    %v659 = vrcp.pop %v650
    %v660 = vmul.f32 1.0, %v659
    %v661 = vrcp.pop %v651
    %v662 = vmul.f32 1.0, %v661
    %v663 = vrcp.pop %v652
    %v664 = vmul.f32 1.0, %v663
    %v665 = vrcp.pop %v653
    %v666 = vmul.f32 1.0, %v665
    %v667 = vrcp.pop %v654
    %v668 = vmul.f32 1.0, %v667
    %v669 = vrcp.pop %v655
    %v670 = vmul.f32 1.0, %v669
    %v671 = vrcp.pop %v656
    %v672 = vmul.f32 1.0, %v671
    %v673 = vld [vmem:[%s11] sm:$0xff]
    %v674 = vld [vmem:[%s11 + $0x8] sm:$0xff]
    %v675 = vld [vmem:[%s11 + $0x10] sm:$0xff]
    %v676 = vld [vmem:[%s11 + $0x18] sm:$0xff]
    %v677 = vld [vmem:[%s11 + $0x20] sm:$0xff]
    %v678 = vld [vmem:[%s11 + $0x28] sm:$0xff]
    %v679 = vld [vmem:[%s11 + $0x30] sm:$0xff]
    %v680 = vld [vmem:[%s11 + $0x38] sm:$0xff]
    %v681 = vld [vmem:[%s12] sm:$0xff]
    %v682 = vld [vmem:[%s12 + $0x8] sm:$0xff]
    %v683 = vld [vmem:[%s12 + $0x10] sm:$0xff]
    %v684 = vld [vmem:[%s12 + $0x18] sm:$0xff]
    %v685 = vld [vmem:[%s12 + $0x20] sm:$0xff]
    %v686 = vld [vmem:[%s12 + $0x28] sm:$0xff]
    %v687 = vld [vmem:[%s12 + $0x30] sm:$0xff]
    %v688 = vld [vmem:[%s12 + $0x38] sm:$0xff]
    %689 = vmatprep.subr.mxu0 0.0
    %690 = vmatpush1.msra.mxu0 %v297
    %691 = vmatprep.subr.mxu0 0.0
    %692 = vmatpush1.msra.mxu0 %v302
    %693 = vmatprep.subr.mxu0 0.0
    %694 = vmatpush1.msra.mxu0 %v307
    %695 = vmatprep.subr.mxu0 0.0
    %696 = vmatpush1.msra.mxu0 %v312
    %697 = vmatprep.subr.mxu0 0.0
    %698 = vmatpush1.msra.mxu0 %v317
    %699 = vmatprep.subr.mxu0 0.0
    %700 = vmatpush1.msra.mxu0 %v322
    %701 = vmatprep.subr.mxu0 0.0
    %702 = vmatpush1.msra.mxu0 %v327
    %703 = vmatprep.subr.mxu0 0.0
    %704 = vmatpush1.msra.mxu0 %v332
    %705 = vmatprep.subr.mxu0 0.0
    %706 = vmatpush1.msra.mxu0 0.0
    %707 = vmatprep.subr.mxu0 0.0
    %708 = vmatpush1.msra.mxu0 0.0
    %709 = vmatprep.subr.mxu0 0.0
    %710 = vmatpush1.msra.mxu0 0.0
    %711 = vmatprep.subr.mxu0 0.0
    %712 = vmatpush1.msra.mxu0 0.0
    %713 = vmatprep.subr.mxu0 0.0
    %714 = vmatpush1.msra.mxu0 0.0
    %715 = vmatprep.subr.mxu0 0.0
    %716 = vmatpush1.msra.mxu0 0.0
    %717 = vmatprep.subr.mxu0 0.0
    %718 = vmatpush1.msra.mxu0 0.0
    %719 = vmatprep.subr.mxu0 0.0
    %720 = vmatpush1.msra.mxu0 0.0
    %721 = vmatprep.subr.mxu0 0.0
    %722 = vmatpush1.msra.mxu0 0.0
    %723 = vmatprep.subr.mxu0 0.0
    %724 = vmatpush1.msra.mxu0 0.0
    %725 = vmatprep.subr.mxu0 0.0
    %726 = vmatpush1.msra.mxu0 0.0
    %727 = vmatprep.subr.mxu0 0.0
    %728 = vmatpush1.msra.mxu0 0.0
    %729 = vmatprep.subr.mxu0 0.0
    %730 = vmatpush1.msra.mxu0 0.0
    %731 = vmatprep.subr.mxu0 0.0
    %732 = vmatpush1.msra.mxu0 0.0
    %733 = vmatprep.subr.mxu0 0.0
    %734 = vmatpush1.msra.mxu0 0.0
    %735 = vmatprep.subr.mxu0 0.0
    %736 = vmatpush1.msra.mxu0 0.0
    %737 = vmatprep.subr.mxu0 0.0
    %738 = vmatpush1.msra.mxu0 0.0
    %739 = vmatprep.subr.mxu0 0.0
    %740 = vmatpush1.msra.mxu0 0.0
    %741 = vmatprep.subr.mxu0 0.0
    %742 = vmatpush1.msra.mxu0 0.0
    %743 = vmatprep.subr.mxu0 0.0
    %744 = vmatpush1.msra.mxu0 0.0
    %745 = vmatprep.subr.mxu0 0.0
    %746 = vmatpush1.msra.mxu0 0.0
    %747 = vmatprep.subr.mxu0 0.0
    %748 = vmatpush1.msra.mxu0 0.0
    %749 = vmatprep.subr.mxu0 0.0
    %750 = vmatpush1.msra.mxu0 0.0
    %751 = vmatprep.subr.mxu0 0.0
    %752 = vmatpush1.msra.mxu0 0.0
    %753 = vmatprep.mubr.f32.mxu0 0.0
    %754 = vmatmul.mubr.f32.gmra.mrb[0].mxu0 %v362
    %v755 = vpop.f32.mrb[0].mxu0
    %v756 = vadd.f32 %v358, %v755
    %v757 = vpop.f32.mrb[0].mxu0
    %758 = vdwg.mxu0
    %v759 = vmul.f32 %v756, %v437
    %v760 = vadd.f32 %v759, %v443
    %v761 = vadd.f32 %v760, 3.0
    %v762 = vmax.f32 %v761, 0.0
    %v763 = vmin.f32 %v762, 6.0
    %v764 = vmul.f32 %v760, %v763
    %v765 = vmul.f32 %v764, 0.16666667
    %767 = vset.pattern.permute.xlu0 0
    %768 = vperm.xlu0 %767, %v681
    %v769 = vpop.permute.xlu0 %768
    %772 = vset.pattern.permute.xlu0 0
    %773 = vperm.xlu0 %772, %v682
    %v774 = vpop.permute.xlu0 %773
    %777 = vset.pattern.permute.xlu0 0
    %778 = vperm.xlu0 %777, %v683
    %v779 = vpop.permute.xlu0 %778
    %782 = vset.pattern.permute.xlu0 0
    %783 = vperm.xlu0 %782, %v684
    %v784 = vpop.permute.xlu0 %783
    %787 = vset.pattern.permute.xlu0 0
    %788 = vperm.xlu0 %787, %v685
    %v789 = vpop.permute.xlu0 %788
    %792 = vset.pattern.permute.xlu0 0
    %793 = vperm.xlu0 %792, %v686
    %v794 = vpop.permute.xlu0 %793
    %797 = vset.pattern.permute.xlu0 0
    %798 = vperm.xlu0 %797, %v687
    %v799 = vpop.permute.xlu0 %798
    %802 = vset.pattern.permute.xlu0 0
    %803 = vperm.xlu0 %802, %v688
    %v804 = vpop.permute.xlu0 %803
    %v807 = vsel %vm491, %v673, 0
    %v810 = vsel %vm491, %v674, 0
    %v813 = vsel %vm491, %v675, 0
    %v816 = vsel %vm491, %v676, 0
    %v819 = vsel %vm491, %v677, 0
    %v822 = vsel %vm491, %v678, 0
    %v825 = vsel %vm491, %v679, 0
    %v828 = vsel %vm491, %v680, 0
    %v831 = vsel %vm516, %v765, 0
    %833 = vmatprep.subr.mxu0 0.0
    %834 = vmatpush1.msra.mxu0 %v831
    %835 = vmatprep.subr.mxu0 0.0
    %836 = vmatpush1.msra.mxu0 0.0
    %837 = vmatprep.subr.mxu0 0.0
    %838 = vmatpush1.msra.mxu0 0.0
    %839 = vmatprep.subr.mxu0 0.0
    %840 = vmatpush1.msra.mxu0 0.0
    %841 = vmatprep.subr.mxu0 0.0
    %842 = vmatpush1.msra.mxu0 0.0
    %843 = vmatprep.subr.mxu0 0.0
    %844 = vmatpush1.msra.mxu0 0.0
    %845 = vmatprep.subr.mxu0 0.0
    %846 = vmatpush1.msra.mxu0 0.0
    %847 = vmatprep.subr.mxu0 0.0
    %848 = vmatpush1.msra.mxu0 0.0
    %849 = vmatprep.subr.mxu0 0.0
    %850 = vmatpush1.msra.mxu0 0.0
    %851 = vmatprep.subr.mxu0 0.0
    %852 = vmatpush1.msra.mxu0 0.0
    %853 = vmatprep.subr.mxu0 0.0
    %854 = vmatpush1.msra.mxu0 0.0
    %855 = vmatprep.subr.mxu0 0.0
    %856 = vmatpush1.msra.mxu0 0.0
    %857 = vmatprep.subr.mxu0 0.0
    %858 = vmatpush1.msra.mxu0 0.0
    %859 = vmatprep.subr.mxu0 0.0
    %860 = vmatpush1.msra.mxu0 0.0
    %861 = vmatprep.subr.mxu0 0.0
    %862 = vmatpush1.msra.mxu0 0.0
    %863 = vmatprep.subr.mxu0 0.0
    %864 = vmatpush1.msra.mxu0 0.0
    %865 = vmatprep.subr.mxu0 0.0
    %866 = vmatpush1.msra.mxu0 0.0
    %867 = vmatprep.subr.mxu0 0.0
    %868 = vmatpush1.msra.mxu0 0.0
    %869 = vmatprep.subr.mxu0 0.0
    %870 = vmatpush1.msra.mxu0 0.0
    %871 = vmatprep.subr.mxu0 0.0
    %872 = vmatpush1.msra.mxu0 0.0
    %873 = vmatprep.subr.mxu0 0.0
    %874 = vmatpush1.msra.mxu0 0.0
    %875 = vmatprep.subr.mxu0 0.0
    %876 = vmatpush1.msra.mxu0 0.0
    %877 = vmatprep.subr.mxu0 0.0
    %878 = vmatpush1.msra.mxu0 0.0
    %879 = vmatprep.subr.mxu0 0.0
    %880 = vmatpush1.msra.mxu0 0.0
    %881 = vmatprep.subr.mxu0 0.0
    %882 = vmatpush1.msra.mxu0 0.0
    %883 = vmatprep.subr.mxu0 0.0
    %884 = vmatpush1.msra.mxu0 0.0
    %885 = vmatprep.subr.mxu0 0.0
    %886 = vmatpush1.msra.mxu0 0.0
    %887 = vmatprep.subr.mxu0 0.0
    %888 = vmatpush1.msra.mxu0 0.0
    %889 = vmatprep.subr.mxu0 0.0
    %890 = vmatpush1.msra.mxu0 0.0
    %891 = vmatprep.subr.mxu0 0.0
    %892 = vmatpush1.msra.mxu0 0.0
    %893 = vmatprep.subr.mxu0 0.0
    %894 = vmatpush1.msra.mxu0 0.0
    %895 = vmatprep.subr.mxu0 0.0
    %896 = vmatpush1.msra.mxu0 0.0
    %897 = vmatprep.mubr.f32.mxu0 0.0
    %898 = vmatmul.mubr.f32.gmra.mrb[0].mxu0 %v807
    %v899 = vpop.f32.mrb[0].mxu0
    %v900 = vadd.f32 %v769, %v899
    %v901 = vpop.f32.mrb[0].mxu0
    %902 = vmatprep.mubr.f32.mxu0 0.0
    %903 = vmatmul.mubr.f32.gmra.mrb[0].mxu0 %v810
    %v904 = vpop.f32.mrb[0].mxu0
    %v905 = vadd.f32 %v774, %v904
    %v906 = vpop.f32.mrb[0].mxu0
    %907 = vmatprep.mubr.f32.mxu0 0.0
    %908 = vmatmul.mubr.f32.gmra.mrb[0].mxu0 %v813
    %v909 = vpop.f32.mrb[0].mxu0
    %v910 = vadd.f32 %v779, %v909
    %v911 = vpop.f32.mrb[0].mxu0
    %912 = vmatprep.mubr.f32.mxu0 0.0
    %913 = vmatmul.mubr.f32.gmra.mrb[0].mxu0 %v816
    %v914 = vpop.f32.mrb[0].mxu0
    %v915 = vadd.f32 %v784, %v914
    %v916 = vpop.f32.mrb[0].mxu0
    %917 = vmatprep.mubr.f32.mxu0 0.0
    %918 = vmatmul.mubr.f32.gmra.mrb[0].mxu0 %v819
    %v919 = vpop.f32.mrb[0].mxu0
    %v920 = vadd.f32 %v789, %v919
    %v921 = vpop.f32.mrb[0].mxu0
    %922 = vmatprep.mubr.f32.mxu0 0.0
    %923 = vmatmul.mubr.f32.gmra.mrb[0].mxu0 %v822
    %v924 = vpop.f32.mrb[0].mxu0
    %v925 = vadd.f32 %v794, %v924
    %v926 = vpop.f32.mrb[0].mxu0
    %927 = vmatprep.mubr.f32.mxu0 0.0
    %928 = vmatmul.mubr.f32.gmra.mrb[0].mxu0 %v825
    %v929 = vpop.f32.mrb[0].mxu0
    %v930 = vadd.f32 %v799, %v929
    %v931 = vpop.f32.mrb[0].mxu0
    %932 = vmatprep.mubr.f32.mxu0 0.0
    %933 = vmatmul.mubr.f32.gmra.mrb[0].mxu0 %v828
    %v934 = vpop.f32.mrb[0].mxu0
    %v935 = vadd.f32 %v804, %v934
    %v936 = vpop.f32.mrb[0].mxu0
    %937 = vdwg.mxu0
    %v938 = vxor.u32 %v900, 2147483648
    %v939 = vxor.u32 %v905, 2147483648
    %v940 = vxor.u32 %v910, 2147483648
    %v941 = vxor.u32 %v915, 2147483648
    %v942 = vxor.u32 %v920, 2147483648
    %v943 = vxor.u32 %v925, 2147483648
    %v944 = vxor.u32 %v930, 2147483648
    %v945 = vxor.u32 %v935, 2147483648
    %v946 = vmul.f32 %v938, 1.442695
    %v947 = vpow.pop %v946
    %v948 = vmul.f32 %v939, 1.442695
    %v949 = vpow.pop %v948
    %v950 = vmul.f32 %v940, 1.442695
    %v951 = vpow.pop %v950
    %v952 = vmul.f32 %v941, 1.442695
    %v953 = vpow.pop %v952
    %v954 = vmul.f32 %v942, 1.442695
    %v955 = vpow.pop %v954
    %v956 = vmul.f32 %v943, 1.442695
    %v957 = vpow.pop %v956
    %v958 = vmul.f32 %v944, 1.442695
    %v959 = vpow.pop %v958
    %v960 = vmul.f32 %v945, 1.442695
    %v961 = vpow.pop %v960
    %v962 = vadd.f32 %v947, 1.0
    %v963 = vadd.f32 %v949, 1.0
    %v964 = vadd.f32 %v951, 1.0
    %v965 = vadd.f32 %v953, 1.0
    %v966 = vadd.f32 %v955, 1.0
    %v967 = vadd.f32 %v957, 1.0
    %v968 = vadd.f32 %v959, 1.0
    %v969 = vadd.f32 %v961, 1.0
    %v970 = vrcp.pop %v962
    %v971 = vmul.f32 1.0, %v970
    %v972 = vrcp.pop %v963
    %v973 = vmul.f32 1.0, %v972
    %v974 = vrcp.pop %v964
    %v975 = vmul.f32 1.0, %v974
    %v976 = vrcp.pop %v965
    %v977 = vmul.f32 1.0, %v976
    %v978 = vrcp.pop %v966
    %v979 = vmul.f32 1.0, %v978
    %v980 = vrcp.pop %v967
    %v981 = vmul.f32 1.0, %v980
    %v982 = vrcp.pop %v968
    %v983 = vmul.f32 1.0, %v982
    %v984 = vrcp.pop %v969
    %v985 = vmul.f32 1.0, %v984
    %v986 = vld [vmem:[%s3] sm:$0xff]
    %v987 = vld [vmem:[%s3 + $0x8] sm:$0xff]
    %v988 = vld [vmem:[%s3 + $0x10] sm:$0xff]
    %v989 = vld [vmem:[%s3 + $0x18] sm:$0xff]
    %vm990 = vcmask 130048
    %v992 = vsel %vm990, %v658, 0
    %v995 = vsel %vm990, %v660, 0
    %v998 = vsel %vm990, %v662, 0
    %v1001 = vsel %vm990, %v664, 0
    %v1004 = vsel %vm990, %v666, 0
    %v1007 = vsel %vm990, %v668, 0
    %v1010 = vsel %vm990, %v670, 0
    %v1013 = vsel %vm990, %v672, 0
    %1015 = vmatprep.subr.mxu0 %v987
    %1016 = vmatpush1.msra.mxu0 %v986
    %1017 = vmatprep.subr.mxu0 %v989
    %1018 = vmatpush1.msra.mxu0 %v988
    %1019 = vmatprep.subr.mxu0 0.0
    %1020 = vmatpush1.msra.mxu0 0.0
    %1021 = vmatprep.subr.mxu0 0.0
    %1022 = vmatpush1.msra.mxu0 0.0
    %1023 = vmatprep.subr.mxu0 0.0
    %1024 = vmatpush1.msra.mxu0 0.0
    %1025 = vmatprep.subr.mxu0 0.0
    %1026 = vmatpush1.msra.mxu0 0.0
    %1027 = vmatprep.subr.mxu0 0.0
    %1028 = vmatpush1.msra.mxu0 0.0
    %1029 = vmatprep.subr.mxu0 0.0
    %1030 = vmatpush1.msra.mxu0 0.0
    %1031 = vmatprep.subr.mxu0 0.0
    %1032 = vmatpush1.msra.mxu0 0.0
    %1033 = vmatprep.subr.mxu0 0.0
    %1034 = vmatpush1.msra.mxu0 0.0
    %1035 = vmatprep.subr.mxu0 0.0
    %1036 = vmatpush1.msra.mxu0 0.0
    %1037 = vmatprep.subr.mxu0 0.0
    %1038 = vmatpush1.msra.mxu0 0.0
    %1039 = vmatprep.subr.mxu0 0.0
    %1040 = vmatpush1.msra.mxu0 0.0
    %1041 = vmatprep.subr.mxu0 0.0
    %1042 = vmatpush1.msra.mxu0 0.0
    %1043 = vmatprep.subr.mxu0 0.0
    %1044 = vmatpush1.msra.mxu0 0.0
    %1045 = vmatprep.subr.mxu0 0.0
    %1046 = vmatpush1.msra.mxu0 0.0
    %1047 = vmatprep.subr.mxu0 0.0
    %1048 = vmatpush1.msra.mxu0 0.0
    %1049 = vmatprep.subr.mxu0 0.0
    %1050 = vmatpush1.msra.mxu0 0.0
    %1051 = vmatprep.subr.mxu0 0.0
    %1052 = vmatpush1.msra.mxu0 0.0
    %1053 = vmatprep.subr.mxu0 0.0
    %1054 = vmatpush1.msra.mxu0 0.0
    %1055 = vmatprep.subr.mxu0 0.0
    %1056 = vmatpush1.msra.mxu0 0.0
    %1057 = vmatprep.subr.mxu0 0.0
    %1058 = vmatpush1.msra.mxu0 0.0
    %1059 = vmatprep.subr.mxu0 0.0
    %1060 = vmatpush1.msra.mxu0 0.0
    %1061 = vmatprep.subr.mxu0 0.0
    %1062 = vmatpush1.msra.mxu0 0.0
    %1063 = vmatprep.subr.mxu0 0.0
    %1064 = vmatpush1.msra.mxu0 0.0
    %1065 = vmatprep.subr.mxu0 0.0
    %1066 = vmatpush1.msra.mxu0 0.0
    %1067 = vmatprep.subr.mxu0 0.0
    %1068 = vmatpush1.msra.mxu0 0.0
    %1069 = vmatprep.subr.mxu0 0.0
    %1070 = vmatpush1.msra.mxu0 0.0
    %1071 = vmatprep.subr.mxu0 0.0
    %1072 = vmatpush1.msra.mxu0 0.0
    %1073 = vmatprep.subr.mxu0 0.0
    %1074 = vmatpush1.msra.mxu0 0.0
    %1075 = vmatprep.subr.mxu0 0.0
    %1076 = vmatpush1.msra.mxu0 0.0
    %1077 = vmatprep.subr.mxu0 0.0
    %1078 = vmatpush1.msra.mxu0 0.0
    %1079 = vmatprep.mubr.f32.mxu0 0.0
    %1080 = vmatmul.mubr.f32.gmra.mrb[0].mxu0 %v992
    %v1081 = vpop.f32.mrb[0].mxu0
    %v1082 = vadd.f32 0.0, %v1081
    %v1083 = vpop.f32.mrb[0].mxu0
    %v1084 = vadd.f32 0.0, %v1083
    %1085 = vmatprep.mubr.f32.mxu0 0.0
    %1086 = vmatmul.mubr.f32.gmra.mrb[0].mxu0 %v995
    %v1087 = vpop.f32.mrb[0].mxu0
    %v1088 = vadd.f32 0.0, %v1087
    %v1089 = vpop.f32.mrb[0].mxu0
    %v1090 = vadd.f32 0.0, %v1089
    %1091 = vmatprep.mubr.f32.mxu0 0.0
    %1092 = vmatmul.mubr.f32.gmra.mrb[0].mxu0 %v998
    %v1093 = vpop.f32.mrb[0].mxu0
    %v1094 = vadd.f32 0.0, %v1093
    %v1095 = vpop.f32.mrb[0].mxu0
    %v1096 = vadd.f32 0.0, %v1095
    %1097 = vmatprep.mubr.f32.mxu0 0.0
    %1098 = vmatmul.mubr.f32.gmra.mrb[0].mxu0 %v1001
    %v1099 = vpop.f32.mrb[0].mxu0
    %v1100 = vadd.f32 0.0, %v1099
    %v1101 = vpop.f32.mrb[0].mxu0
    %v1102 = vadd.f32 0.0, %v1101
    %1103 = vmatprep.mubr.f32.mxu0 0.0
    %1104 = vmatmul.mubr.f32.gmra.mrb[0].mxu0 %v1004
    %v1105 = vpop.f32.mrb[0].mxu0
    %v1106 = vadd.f32 0.0, %v1105
    %v1107 = vpop.f32.mrb[0].mxu0
    %v1108 = vadd.f32 0.0, %v1107
    %1109 = vmatprep.mubr.f32.mxu0 0.0
    %1110 = vmatmul.mubr.f32.gmra.mrb[0].mxu0 %v1007
    %v1111 = vpop.f32.mrb[0].mxu0
    %v1112 = vadd.f32 0.0, %v1111
    %v1113 = vpop.f32.mrb[0].mxu0
    %v1114 = vadd.f32 0.0, %v1113
    %1115 = vmatprep.mubr.f32.mxu0 0.0
    %1116 = vmatmul.mubr.f32.gmra.mrb[0].mxu0 %v1010
    %v1117 = vpop.f32.mrb[0].mxu0
    %v1118 = vadd.f32 0.0, %v1117
    %v1119 = vpop.f32.mrb[0].mxu0
    %v1120 = vadd.f32 0.0, %v1119
    %1121 = vmatprep.mubr.f32.mxu0 0.0
    %1122 = vmatmul.mubr.f32.gmra.mrb[0].mxu0 %v1013
    %v1123 = vpop.f32.mrb[0].mxu0
    %v1124 = vadd.f32 0.0, %v1123
    %v1125 = vpop.f32.mrb[0].mxu0
    %v1126 = vadd.f32 0.0, %v1125
    %1127 = vdwg.mxu0
    %v1128 = vld [vmem:[%s4] sm:$0xff]
    %v1129 = vld [vmem:[%s4 + $0x8] sm:$0xff]
    %v1130 = vld [vmem:[%s4 + $0x10] sm:$0xff]
    %v1131 = vld [vmem:[%s4 + $0x18] sm:$0xff]
    %v1133 = vsel %vm990, %v971, 0
    %v1136 = vsel %vm990, %v973, 0
    %v1139 = vsel %vm990, %v975, 0
    %v1142 = vsel %vm990, %v977, 0
    %v1145 = vsel %vm990, %v979, 0
    %v1148 = vsel %vm990, %v981, 0
    %v1151 = vsel %vm990, %v983, 0
    %v1154 = vsel %vm990, %v985, 0
    %1156 = vmatprep.subr.mxu0 %v1129
    %1157 = vmatpush1.msra.mxu0 %v1128
    %1158 = vmatprep.subr.mxu0 %v1131
    %1159 = vmatpush1.msra.mxu0 %v1130
    %1160 = vmatprep.subr.mxu0 0.0
    %1161 = vmatpush1.msra.mxu0 0.0
    %1162 = vmatprep.subr.mxu0 0.0
    %1163 = vmatpush1.msra.mxu0 0.0
    %1164 = vmatprep.subr.mxu0 0.0
    %1165 = vmatpush1.msra.mxu0 0.0
    %1166 = vmatprep.subr.mxu0 0.0
    %1167 = vmatpush1.msra.mxu0 0.0
    %1168 = vmatprep.subr.mxu0 0.0
    %1169 = vmatpush1.msra.mxu0 0.0
    %1170 = vmatprep.subr.mxu0 0.0
    %1171 = vmatpush1.msra.mxu0 0.0
    %1172 = vmatprep.subr.mxu0 0.0
    %1173 = vmatpush1.msra.mxu0 0.0
    %1174 = vmatprep.subr.mxu0 0.0
    %1175 = vmatpush1.msra.mxu0 0.0
    %1176 = vmatprep.subr.mxu0 0.0
    %1177 = vmatpush1.msra.mxu0 0.0
    %1178 = vmatprep.subr.mxu0 0.0
    %1179 = vmatpush1.msra.mxu0 0.0
    %1180 = vmatprep.subr.mxu0 0.0
    %1181 = vmatpush1.msra.mxu0 0.0
    %1182 = vmatprep.subr.mxu0 0.0
    %1183 = vmatpush1.msra.mxu0 0.0
    %1184 = vmatprep.subr.mxu0 0.0
    %1185 = vmatpush1.msra.mxu0 0.0
    %1186 = vmatprep.subr.mxu0 0.0
    %1187 = vmatpush1.msra.mxu0 0.0
    %1188 = vmatprep.subr.mxu0 0.0
    %1189 = vmatpush1.msra.mxu0 0.0
    %1190 = vmatprep.subr.mxu0 0.0
    %1191 = vmatpush1.msra.mxu0 0.0
    %1192 = vmatprep.subr.mxu0 0.0
    %1193 = vmatpush1.msra.mxu0 0.0
    %1194 = vmatprep.subr.mxu0 0.0
    %1195 = vmatpush1.msra.mxu0 0.0
    %1196 = vmatprep.subr.mxu0 0.0
    %1197 = vmatpush1.msra.mxu0 0.0
    %1198 = vmatprep.subr.mxu0 0.0
    %1199 = vmatpush1.msra.mxu0 0.0
    %1200 = vmatprep.subr.mxu0 0.0
    %1201 = vmatpush1.msra.mxu0 0.0
    %1202 = vmatprep.subr.mxu0 0.0
    %1203 = vmatpush1.msra.mxu0 0.0
    %1204 = vmatprep.subr.mxu0 0.0
    %1205 = vmatpush1.msra.mxu0 0.0
    %1206 = vmatprep.subr.mxu0 0.0
    %1207 = vmatpush1.msra.mxu0 0.0
    %1208 = vmatprep.subr.mxu0 0.0
    %1209 = vmatpush1.msra.mxu0 0.0
    %1210 = vmatprep.subr.mxu0 0.0
    %1211 = vmatpush1.msra.mxu0 0.0
    %1212 = vmatprep.subr.mxu0 0.0
    %1213 = vmatpush1.msra.mxu0 0.0
    %1214 = vmatprep.subr.mxu0 0.0
    %1215 = vmatpush1.msra.mxu0 0.0
    %1216 = vmatprep.subr.mxu0 0.0
    %1217 = vmatpush1.msra.mxu0 0.0
    %1218 = vmatprep.subr.mxu0 0.0
    %1219 = vmatpush1.msra.mxu0 0.0
    %1220 = vmatprep.mubr.f32.mxu0 0.0
    %1221 = vmatmul.mubr.f32.gmra.mrb[0].mxu0 %v1133
    %v1222 = vpop.f32.mrb[0].mxu0
    %v1223 = vadd.f32 0.0, %v1222
    %v1224 = vpop.f32.mrb[0].mxu0
    %v1225 = vadd.f32 0.0, %v1224
    %1226 = vmatprep.mubr.f32.mxu0 0.0
    %1227 = vmatmul.mubr.f32.gmra.mrb[0].mxu0 %v1136
    %v1228 = vpop.f32.mrb[0].mxu0
    %v1229 = vadd.f32 0.0, %v1228
    %v1230 = vpop.f32.mrb[0].mxu0
    %v1231 = vadd.f32 0.0, %v1230
    %1232 = vmatprep.mubr.f32.mxu0 0.0
    %1233 = vmatmul.mubr.f32.gmra.mrb[0].mxu0 %v1139
    %v1234 = vpop.f32.mrb[0].mxu0
    %v1235 = vadd.f32 0.0, %v1234
    %v1236 = vpop.f32.mrb[0].mxu0
    %v1237 = vadd.f32 0.0, %v1236
    %1238 = vmatprep.mubr.f32.mxu0 0.0
    %1239 = vmatmul.mubr.f32.gmra.mrb[0].mxu0 %v1142
    %v1240 = vpop.f32.mrb[0].mxu0
    %v1241 = vadd.f32 0.0, %v1240
    %v1242 = vpop.f32.mrb[0].mxu0
    %v1243 = vadd.f32 0.0, %v1242
    %1244 = vmatprep.mubr.f32.mxu0 0.0
    %1245 = vmatmul.mubr.f32.gmra.mrb[0].mxu0 %v1145
    %v1246 = vpop.f32.mrb[0].mxu0
    %v1247 = vadd.f32 0.0, %v1246
    %v1248 = vpop.f32.mrb[0].mxu0
    %v1249 = vadd.f32 0.0, %v1248
    %1250 = vmatprep.mubr.f32.mxu0 0.0
    %1251 = vmatmul.mubr.f32.gmra.mrb[0].mxu0 %v1148
    %v1252 = vpop.f32.mrb[0].mxu0
    %v1253 = vadd.f32 0.0, %v1252
    %v1254 = vpop.f32.mrb[0].mxu0
    %v1255 = vadd.f32 0.0, %v1254
    %1256 = vmatprep.mubr.f32.mxu0 0.0
    %1257 = vmatmul.mubr.f32.gmra.mrb[0].mxu0 %v1151
    %v1258 = vpop.f32.mrb[0].mxu0
    %v1259 = vadd.f32 0.0, %v1258
    %v1260 = vpop.f32.mrb[0].mxu0
    %v1261 = vadd.f32 0.0, %v1260
    %1262 = vmatprep.mubr.f32.mxu0 0.0
    %1263 = vmatmul.mubr.f32.gmra.mrb[0].mxu0 %v1154
    %v1264 = vpop.f32.mrb[0].mxu0
    %v1265 = vadd.f32 0.0, %v1264
    %v1266 = vpop.f32.mrb[0].mxu0
    %v1267 = vadd.f32 0.0, %v1266
    %1268 = vdwg.mxu0
    %v1269 = vmul.f32 %v1082, %v1223
    %v1270 = vmul.f32 %v1084, %v1225
    %v1271 = vmul.f32 %v1088, %v1229
    %v1272 = vmul.f32 %v1090, %v1231
    %v1273 = vmul.f32 %v1094, %v1235
    %v1274 = vmul.f32 %v1096, %v1237
    %v1275 = vmul.f32 %v1100, %v1241
    %v1276 = vmul.f32 %v1102, %v1243
    %v1277 = vmul.f32 %v1106, %v1247
    %v1278 = vmul.f32 %v1108, %v1249
    %v1279 = vmul.f32 %v1112, %v1253
    %v1280 = vmul.f32 %v1114, %v1255
    %v1281 = vmul.f32 %v1118, %v1259
    %v1282 = vmul.f32 %v1120, %v1261
    %v1283 = vmul.f32 %v1124, %v1265
    %v1284 = vmul.f32 %v1126, %v1267
    %v1285 = vmul.f32 %v45, %v1269
    %v1286 = vmul.f32 %v46, %v1270
    %v1287 = vmul.f32 %v47, %v1271
    %v1288 = vmul.f32 %v48, %v1272
    %v1289 = vmul.f32 %v49, %v1273
    %v1290 = vmul.f32 %v50, %v1274
    %v1291 = vmul.f32 %v51, %v1275
    %v1292 = vmul.f32 %v52, %v1276
    %v1293 = vmul.f32 %v53, %v1277
    %v1294 = vmul.f32 %v54, %v1278
    %v1295 = vmul.f32 %v55, %v1279
    %v1296 = vmul.f32 %v56, %v1280
    %v1297 = vmul.f32 %v57, %v1281
    %v1298 = vmul.f32 %v58, %v1282
    %v1299 = vmul.f32 %v59, %v1283
    %v1300 = vmul.f32 %v60, %v1284
    %1301 = vst [vmem:[#allocation2] sm:$0xff] %v1285
    %1302 = vst [vmem:[#allocation2 + $0x8] sm:$0xff] %v1286
    %1303 = vst [vmem:[#allocation2 + $0x10] sm:$0xff] %v1287
    %1304 = vst [vmem:[#allocation2 + $0x18] sm:$0xff] %v1288
    %1305 = vst [vmem:[#allocation2 + $0x20] sm:$0xff] %v1289
    %1306 = vst [vmem:[#allocation2 + $0x28] sm:$0xff] %v1290
    %1307 = vst [vmem:[#allocation2 + $0x30] sm:$0xff] %v1291
    %1308 = vst [vmem:[#allocation2 + $0x38] sm:$0xff] %v1292
    %1309 = vst [vmem:[#allocation2 + $0x40] sm:$0xff] %v1293
    %1310 = vst [vmem:[#allocation2 + $0x48] sm:$0xff] %v1294
    %1311 = vst [vmem:[#allocation2 + $0x50] sm:$0xff] %v1295
    %1312 = vst [vmem:[#allocation2 + $0x58] sm:$0xff] %v1296
    %1313 = vst [vmem:[#allocation2 + $0x60] sm:$0xff] %v1297
    %1314 = vst [vmem:[#allocation2 + $0x68] sm:$0xff] %v1298
    %1315 = vst [vmem:[#allocation2 + $0x70] sm:$0xff] %v1299
    %1316 = vst [vmem:[#allocation2 + $0x78] sm:$0xff] %v1300
    // Predicated region
    $region54: #{tpu_custom_call.1} parent=1 // pred_check
      _
    $region55: #{tpu_custom_call.1} parent=1 // pred_check_branch
      %1318 = sbr.rel (0) target = $region57
    $region56: #{tpu_custom_call.1} parent=1 // pred_region
      %s1320 = ssub.s32 2048, 2048
      %1321 = vsyncadd [#allocation3], %s1320
      %s1322 = sshll.u32 [#allocation2], 4
      %s1323 = int_to_ptr.vmem [resolvable:$true] %s1322
      %1328 = dma.vmem_to_hbm [thread:$0]  %s1323, 2048, %s13, [#allocation3], 256, 256, 16
    $region57: #{tpu_custom_call.1} parent=1 // pred_fallthru
      _
    // Predicated region
    $region58: #{tpu_custom_call.1} parent=1 // pred_check
      _
    $region59: #{tpu_custom_call.1} parent=1 // pred_check_branch
      %1330 = sbr.rel (0) target = $region61
    $region60: #{tpu_custom_call.1} parent=1 // pred_region
      %1331 = dma.done [#allocation3], 2048
    $region61: #{tpu_custom_call.1} parent=1 // pred_fallthru
      _
    %1332 = vsyncpa [#allocation3], 1

</llo_original>
